<compile_context>
chip_gen: v5e
topology: v5e:2x2
jax: 0.10.0
libtpu: 0.0.40
codegen_flags: <defaults>
</compile_context>

<pallas_src>
import functools
import math

import jax
import jax.numpy as jnp
from jax import lax
from jax.experimental import pallas as pl
from jax.experimental.pallas import tpu as pltpu

# ----------------------------- config (small) -------------------------------
BATCH        = 2
IMG_C        = 3
IMG_HW       = 16
PATCH        = 8
HIDDEN       = 32
NUM_HEADS    = 4
HEAD_DIM     = HIDDEN // NUM_HEADS
MLP_DIM      = 4 * HIDDEN
VOCAB        = 64
VOCAB_PAD    = 128                         # lane-dense logits / CE path
TEXT_LEN     = 8
N_ENC_LAYERS = 1
N_DEC_LAYERS = 1
LABEL_SMOOTHING = 0.1                      # BLIP's text LM head uses 0.1

N_PATCH     = (IMG_HW // PATCH) ** 2       # 4 patches / image
SEQ_VIS     = N_PATCH + 1                  # CLS + patches = 5 (logical)
SEQ_VIS_PAD = 8                            # padded to a clean sublane tile
VIS_ROWS    = BATCH * SEQ_VIS_PAD          # 16
TXT_ROWS    = BATCH * TEXT_LEN             # 16
PATCH_DIM   = IMG_C * PATCH * PATCH        # 192
SCALE       = 1.0 / math.sqrt(HEAD_DIM)
NEG_INF     = -1e9
W_SUM       = float(BATCH * (TEXT_LEN - 1))  # shifted-loss token count (static)
LANES       = 128

F32  = jnp.float32
BF16 = jnp.bfloat16

_CONTRACT_LAST = (((1,), (1,)), ((), ()))  # A (m,k) x B (n,k) -> (m,n)

assert VIS_ROWS == TXT_ROWS  # single shared head block-mask


# --------------------------- in-kernel helpers -------------------------------
def _ln(x, g, b, eps):
    mu = jnp.mean(x, axis=-1, keepdims=True)
    xc = x - mu
    var = jnp.mean(xc * xc, axis=-1, keepdims=True)
    return xc * lax.rsqrt(var + eps) * g + b


def _mlp(x_bf, fc1_w, fc1_b, fc2_w, fc2_b):
    h = jnp.dot(x_bf, fc1_w, preferred_element_type=F32) + fc1_b
    # TODO(synk): HF BLIP uses exact erf GELU; the tanh approximation is used.
    h = jax.nn.gelu(h)
    return jnp.dot(h.astype(BF16), fc2_w, preferred_element_type=F32) + fc2_b


def _mha(q_bf, kv_bf, wq, bq, wkv, bkv, wo, bo, add_mask, bm_f, bm_bf):
    """Block-packed multi-head attention (6 full-width matmuls, no head loop).

    q_bf: (R, D) bf16, kv_bf: (Rk, D) bf16.  `bm_f`/`bm_bf` is the
    (H*Rk, D) head block-mask; `add_mask` is the (R, H*Rk) additive
    batch/causal mask already tiled per head.
    """
    q = jnp.dot(q_bf, wq, preferred_element_type=F32) + bq            # (R , D)
    kv = jnp.dot(kv_bf, wkv, preferred_element_type=F32) + bkv        # (Rk,2D)
    k = kv[:, :HIDDEN]
    v = kv[:, HIDDEN:]
    # block-diagonal K / V layouts: row h*Rk+j keeps only head-h lanes of row j
    kbig = (jnp.concatenate([k] * NUM_HEADS, axis=0) * bm_f).astype(BF16)
    vbig = (jnp.concatenate([v] * NUM_HEADS, axis=0) * bm_f).astype(BF16)
    s = lax.dot_general(q.astype(BF16), kbig, _CONTRACT_LAST,
                        preferred_element_type=F32) * SCALE + add_mask  # (R,H*Rk)
    s = s - jnp.max(s, axis=-1, keepdims=True)        # global row max (shift-inv.)
    p = jnp.exp(s).astype(BF16)
    ctx = jnp.dot(p, vbig, preferred_element_type=F32)                 # (R, D)
    den = jnp.dot(p, bm_bf, preferred_element_type=F32)                # (R, D)
    ctx = ctx * pl.reciprocal(den + 1e-30, approx=True)
    return jnp.dot(ctx.astype(BF16), wo, preferred_element_type=F32) + bo


# ------------------------------ fused kernel ---------------------------------
def _blip_kernel(iw, iff, patches_ref, idsoh_ref, tgtw_ref, wbuf, fbuf,
                 logits_ref, loss_ref):
    def w(name):                       # static slice into the packed bf16 buffer
        off, r, c = iw[name]
        return wbuf[off:off + r, 0:c]

    def f(name):                       # static slice into the packed f32 buffer
        off, r, c = iff[name]
        return fbuf[off:off + r, 0:c]

    bm_f = f("blockmask")              # (H*16, 32) head block-mask
    bm_bf = bm_f.astype(BF16)

    # ---------------- vision ViT encoder (pre-LN) ----------------
    x = jnp.dot(patches_ref[...], w("patch_w"),
                preferred_element_type=F32) + f("vis_add")             # (16, 32)
    vis_mask = f("vis_mask")                                           # (16, 64)
    for i in range(N_ENC_LAYERS):
        p = f"enc{i}_"
        h = _ln(x, f(p + "ln1_g"), f(p + "ln1_b"), 1e-6).astype(BF16)
        x = x + _mha(h, h, w(p + "wq"), f(p + "bq"), w(p + "wkv"), f(p + "bkv"),
                     w(p + "wo"), f(p + "bo"), vis_mask, bm_f, bm_bf)
        h = _ln(x, f(p + "ln2_g"), f(p + "ln2_b"), 1e-6).astype(BF16)
        x = x + _mlp(h, w(p + "fc1_w"), f(p + "fc1_b"),
                     w(p + "fc2_w"), f(p + "fc2_b"))
    enc_bf = _ln(x, f("vis_post_ln_g"), f("vis_post_ln_b"), 1e-6).astype(BF16)

    # ------------- text decoder (post-LN, causal self + cross) -------------
    wemb = w("word_emb")                                               # (128, 32)
    x = jnp.dot(idsoh_ref[...], wemb,
                preferred_element_type=F32) + f("txt_pos")             # (16, 32)
    x = _ln(x, f("emb_ln_g"), f("emb_ln_b"), 1e-12)
    self_mask = f("self_mask")
    cross_mask = f("cross_mask")
    for i in range(N_DEC_LAYERS):
        p = f"dec{i}_"
        xb = x.astype(BF16)
        sa = _mha(xb, xb, w(p + "sa_wq"), f(p + "sa_bq"),
                  w(p + "sa_wkv"), f(p + "sa_bkv"),
                  w(p + "sa_wo"), f(p + "sa_bo"), self_mask, bm_f, bm_bf)
        x = _ln(x + sa, f(p + "ln1_g"), f(p + "ln1_b"), 1e-12)
        ca = _mha(x.astype(BF16), enc_bf, w(p + "ca_wq"), f(p + "ca_bq"),
                  w(p + "ca_wkv"), f(p + "ca_bkv"),
                  w(p + "ca_wo"), f(p + "ca_bo"), cross_mask, bm_f, bm_bf)
        x = _ln(x + ca, f(p + "ln2_g"), f(p + "ln2_b"), 1e-12)
        x = _ln(x + _mlp(x.astype(BF16), w(p + "fc1_w"), f(p + "fc1_b"),
                         w(p + "fc2_w"), f(p + "fc2_b")),
                f(p + "ln3_g"), f(p + "ln3_b"), 1e-12)

    # ----------- tied LM head (transposed contraction) + smoothed CE -----------
    logits = lax.dot_general(x.astype(BF16), wemb, _CONTRACT_LAST,
                             preferred_element_type=F32) + f("lm_bias")  # (16,128)
    logits_ref[...] = logits

    m = jnp.max(logits, axis=-1, keepdims=True)
    lse = jnp.log(jnp.sum(jnp.exp(logits - m), axis=-1, keepdims=True)) + m
    tgtw = tgtw_ref[...]                         # weighted smoothed target distr.
    wrow = jnp.sum(tgtw, axis=-1, keepdims=True)  # per-row loss weight (0 at EOS)
    # TODO(synk): no ignore_index / pad-token masking (HF masks labels == -100).
    loss_ref[0, 0] = (jnp.sum(lse * wrow) - jnp.sum(logits * tgtw)) * (1.0 / W_SUM)


# --------------------------- host-side param packing -------------------------
def _pack(entries, dtype, align):
    """Pack (name, 2D array) entries into one (rows, 128) buffer + static index."""
    chunks, index, row = [], {}, 0
    for name, arr in entries:
        arr = jnp.asarray(arr, dtype)
        r, c = arr.shape
        index[name] = (row, r, c)
        rp = (-r) % align
        chunks.append(jnp.pad(arr, ((0, rp), (0, LANES - c))))
        row += r + rp
    return jnp.concatenate(chunks, axis=0), index


def pack_params(params):
    vis, txt = params["vision"], params["text"]

    # ----- static masks / fused layout tables (precomputed on host) -----
    b_vis = jnp.repeat(jnp.arange(BATCH), SEQ_VIS_PAD)
    p_vis = jnp.tile(jnp.arange(SEQ_VIS_PAD), (BATCH,))
    b_txt = jnp.repeat(jnp.arange(BATCH), TEXT_LEN)
    p_txt = jnp.tile(jnp.arange(TEXT_LEN), (BATCH,))

    vis_ok = (b_vis[:, None] == b_vis[None, :]) & (p_vis[None, :] < SEQ_VIS)
    self_ok = (b_txt[:, None] == b_txt[None, :]) & (p_txt[:, None] >= p_txt[None, :])
    cross_ok = (b_txt[:, None] == b_vis[None, :]) & (p_vis[None, :] < SEQ_VIS)

    def big(ok):  # (16,16) bool -> (16, H*16) additive mask, tiled per head
        return jnp.tile(jnp.where(ok, 0.0, NEG_INF).astype(F32), (1, NUM_HEADS))

    blockmask = (jnp.repeat(jnp.arange(NUM_HEADS), TXT_ROWS)[:, None]
                 == (jnp.arange(HIDDEN) // HEAD_DIM)[None, :]).astype(F32)

    # CLS / patch-bias / positional embedding fused into one add table
    pos_pad = jnp.pad(vis["pos"], ((0, SEQ_VIS_PAD - SEQ_VIS), (0, 0)))
    base = jnp.where((jnp.arange(SEQ_VIS_PAD) == 0)[:, None],
                     vis["cls"], vis["patch_b"])
    vis_add = jnp.tile(base + pos_pad, (BATCH, 1))                     # (16, 32)
    txt_pos = jnp.tile(txt["pos_emb"], (BATCH, 1))                     # (16, 32)

    word_emb_pad = jnp.pad(txt["word_emb"], ((0, VOCAB_PAD - VOCAB), (0, 0)))
    lm_bias_pad = jnp.concatenate(
        [txt["lm_bias"], jnp.full((1, VOCAB_PAD - VOCAB), NEG_INF, F32)], axis=1)

    # ----- bf16 MXU-weight buffer / f32 vector buffer entry lists -----
    wlist = [("patch_w", vis["patch_w"])]
    flist = [("vis_add", vis_add), ("vis_mask", big(vis_ok)),
             ("self_mask", big(self_ok)), ("cross_mask", big(cross_ok)),
             ("blockmask", blockmask),
             ("vis_post_ln_g", vis["post_ln_g"]), ("vis_post_ln_b", vis["post_ln_b"]),
             ("txt_pos", txt_pos),
             ("emb_ln_g", txt["emb_ln_g"]), ("emb_ln_b", txt["emb_ln_b"]),
             ("lm_bias", lm_bias_pad)]

    for i, lyr in enumerate(vis["layers"]):
        p, a = f"enc{i}_", lyr["attn"]
        wlist += [(p + "wq", a["wq"]), (p + "wkv", a["wkv"]), (p + "wo", a["wo"]),
                  (p + "fc1_w", lyr["fc1_w"]), (p + "fc2_w", lyr["fc2_w"])]
        flist += [(p + "bq", a["bq"]), (p + "bkv", a["bkv"]), (p + "bo", a["bo"]),
                  (p + "ln1_g", lyr["ln1_g"]), (p + "ln1_b", lyr["ln1_b"]),
                  (p + "ln2_g", lyr["ln2_g"]), (p + "ln2_b", lyr["ln2_b"]),
                  (p + "fc1_b", lyr["fc1_b"]), (p + "fc2_b", lyr["fc2_b"])]

    wlist.append(("word_emb", word_emb_pad))
    for i, lyr in enumerate(txt["layers"]):
        p, sa, ca = f"dec{i}_", lyr["self_attn"], lyr["cross_attn"]
        wlist += [(p + "sa_wq", sa["wq"]), (p + "sa_wkv", sa["wkv"]), (p + "sa_wo", sa["wo"]),
                  (p + "ca_wq", ca["wq"]), (p + "ca_wkv", ca["wkv"]), (p + "ca_wo", ca["wo"]),
                  (p + "fc1_w", lyr["fc1_w"]), (p + "fc2_w", lyr["fc2_w"])]
        flist += [(p + "sa_bq", sa["bq"]), (p + "sa_bkv", sa["bkv"]), (p + "sa_bo", sa["bo"]),
                  (p + "ca_bq", ca["bq"]), (p + "ca_bkv", ca["bkv"]), (p + "ca_bo", ca["bo"]),
                  (p + "ln1_g", lyr["ln1_g"]), (p + "ln1_b", lyr["ln1_b"]),
                  (p + "ln2_g", lyr["ln2_g"]), (p + "ln2_b", lyr["ln2_b"]),
                  (p + "ln3_g", lyr["ln3_g"]), (p + "ln3_b", lyr["ln3_b"]),
                  (p + "fc1_b", lyr["fc1_b"]), (p + "fc2_b", lyr["fc2_b"])]

    wbuf, iw = _pack(wlist, BF16, align=16)
    fbuf, iff = _pack(flist, F32, align=8)
    return wbuf, fbuf, iw, iff


# ------------------------------ host wrapper ---------------------------------
def make_blip_loss(iw, iff):
    kern = functools.partial(_blip_kernel, iw, iff)
    call = pl.pallas_call(
        kern,
        out_shape=(jax.ShapeDtypeStruct((TXT_ROWS, VOCAB_PAD), jnp.float32),
                   jax.ShapeDtypeStruct((1, 1), jnp.float32)),
        in_specs=[pl.BlockSpec(memory_space=pltpu.MemorySpace.VMEM)] * 5,
        out_specs=(pl.BlockSpec(memory_space=pltpu.MemorySpace.VMEM),
                   pl.BlockSpec(memory_space=pltpu.MemorySpace.SMEM)),
    )

    @jax.jit
    def blip_loss(pixel_values, input_ids, wbuf, fbuf):
        """Equivalent of get_output_loss: encoder -> decoder -> shifted LM loss."""
        hp = IMG_HW // PATCH
        patches = (pixel_values
                   .reshape(BATCH, IMG_C, hp, PATCH, hp, PATCH)
                   .transpose(0, 2, 4, 1, 3, 5)
                   .reshape(BATCH, N_PATCH, PATCH_DIM))
        patches_pad = jnp.zeros((BATCH, SEQ_VIS_PAD, PATCH_DIM), jnp.float32)
        patches_pad = patches_pad.at[:, 1:1 + N_PATCH, :].set(patches)
        patches_pad = patches_pad.reshape(VIS_ROWS, PATCH_DIM).astype(BF16)

        ids = input_ids.astype(jnp.int32).reshape(TXT_ROWS)
        ids_oh = jax.nn.one_hot(ids, VOCAB_PAD, dtype=BF16)            # (16,128)

        # shifted labels: last position of each sequence carries zero weight
        shifted = jnp.concatenate(
            [input_ids[:, 1:], jnp.zeros((BATCH, 1), input_ids.dtype)], axis=1)
        lab_oh = jax.nn.one_hot(shifted.astype(jnp.int32).reshape(TXT_ROWS),
                                VOCAB_PAD, dtype=jnp.float32)
        real = (jnp.arange(VOCAB_PAD) < VOCAB).astype(jnp.float32)
        tgt = (1.0 - LABEL_SMOOTHING) * lab_oh + (LABEL_SMOOTHING / VOCAB) * real[None, :]
        wrow = (jnp.arange(TXT_ROWS) % TEXT_LEN != TEXT_LEN - 1).astype(jnp.float32)
        tgtw = tgt * wrow[:, None]                                      # (16,128)

        logits_pad, loss = call(patches_pad, ids_oh, tgtw, wbuf, fbuf)
        logits = logits_pad[:, :VOCAB].reshape(BATCH, TEXT_LEN, VOCAB)
        return logits, loss[0, 0]

    return blip_loss


# ------------------------------ param init ----------------------------------
def _init_params(key):
    keys = iter(jax.random.split(key, 64))

    def nrm(shape):
        return jax.random.normal(next(keys), shape, jnp.float32) * 0.02

    ones_d = jnp.ones((1, HIDDEN), jnp.float32)
    zeros_d = jnp.zeros((1, HIDDEN), jnp.float32)

    def attn_params():
        return {"wq": nrm((HIDDEN, HIDDEN)),
                "bq": jnp.zeros((1, HIDDEN), jnp.float32),
                "wkv": nrm((HIDDEN, 2 * HIDDEN)),            # fused K|V
                "bkv": jnp.zeros((1, 2 * HIDDEN), jnp.float32),
                "wo": nrm((HIDDEN, HIDDEN)),
                "bo": jnp.zeros((1, HIDDEN), jnp.float32)}

    def mlp_params():
        return {"fc1_w": nrm((HIDDEN, MLP_DIM)),
                "fc1_b": jnp.zeros((1, MLP_DIM), jnp.float32),
                "fc2_w": nrm((MLP_DIM, HIDDEN)),
                "fc2_b": jnp.zeros((1, HIDDEN), jnp.float32)}

    vision = {
        "patch_w": nrm((PATCH_DIM, HIDDEN)),
        "patch_b": jnp.zeros((1, HIDDEN), jnp.float32),
        "cls": nrm((1, HIDDEN)),
        "pos": nrm((SEQ_VIS, HIDDEN)),
        "post_ln_g": ones_d, "post_ln_b": zeros_d,
        "layers": [dict(ln1_g=ones_d, ln1_b=zeros_d, ln2_g=ones_d, ln2_b=zeros_d,
                        attn=attn_params(), **mlp_params())
                   for _ in range(N_ENC_LAYERS)],
    }
    text = {
        "word_emb": nrm((VOCAB, HIDDEN)),
        "pos_emb": nrm((TEXT_LEN, HIDDEN)),
        "emb_ln_g": ones_d, "emb_ln_b": zeros_d,
        "lm_bias": jnp.zeros((1, VOCAB), jnp.float32),
        "layers": [dict(self_attn=attn_params(), cross_attn=attn_params(),
                        ln1_g=ones_d, ln1_b=zeros_d, ln2_g=ones_d, ln2_b=zeros_d,
                        ln3_g=ones_d, ln3_b=zeros_d, **mlp_params())
                   for _ in range(N_DEC_LAYERS)],
    }
    return {"vision": vision, "text": text}


# ---------------------------------- main -------------------------------------
if __name__ == "__main__":
    root = jax.random.PRNGKey(0)
    k_img, k_txt, k_par = jax.random.split(root, 3)

    pixel_values = jax.random.uniform(k_img, (BATCH, IMG_C, IMG_HW, IMG_HW),
                                      dtype=jnp.float32)           # NCHW like PyTorch
    input_ids = jax.random.randint(k_txt, (BATCH, TEXT_LEN), 0, VOCAB,
                                   dtype=jnp.int32)
    params = _init_params(k_par)
    wbuf, fbuf, iw, iff = pack_params(params)

    blip_loss = make_blip_loss(iw, iff)
    logits, loss = blip_loss(pixel_values, input_ids, wbuf, fbuf)
    jax.block_until_ready((logits, loss))

    assert logits.shape == (BATCH, TEXT_LEN, VOCAB)
    assert loss.shape == () and bool(jnp.isfinite(loss))
    print("KERNEL_OK")
</pallas_src>

<mosaic_0001>
module attributes {stable_mosaic.version = 11 : i64} {
  func.func @_blip_kernel(%arg0: memref<16x192xbf16, #tpu.memory_space<vmem>>, %arg1: memref<16x128xbf16, #tpu.memory_space<vmem>>, %arg2: memref<16x128xf32, #tpu.memory_space<vmem>>, %arg3: memref<928x128xbf16, #tpu.memory_space<vmem>>, %arg4: memref<368x128xf32, #tpu.memory_space<vmem>>, %arg5: memref<16x128xf32, #tpu.memory_space<vmem>>, %arg6: memref<1x1xf32, #tpu.memory_space<smem>>) attributes {dimension_semantics = [], scalar_prefetch = 0 : i64, scratch_operands = 0 : i64, tpu.core_type = #tpu.core_type<tc>} {
    %c64 = arith.constant 64 : index
    %c0 = arith.constant 0 : index
    %0 = vector.load %arg4[%c64, %c0] : memref<368x128xf32, #tpu.memory_space<vmem>>, vector<64x32xf32>
    %1 = arith.truncf %0 : vector<64x32xf32> to vector<64x32xbf16>
    %c0_0 = arith.constant 0 : index
    %c0_1 = arith.constant 0 : index
    %2 = vector.load %arg0[%c0_0, %c0_1] : memref<16x192xbf16, #tpu.memory_space<vmem>>, vector<16x192xbf16>
    %c0_2 = arith.constant 0 : index
    %c0_3 = arith.constant 0 : index
    %3 = vector.load %arg3[%c0_2, %c0_3] : memref<928x128xbf16, #tpu.memory_space<vmem>>, vector<192x32xbf16>
    %cst = arith.constant dense<0.000000e+00> : vector<16x32xf32>
    %4 = tpu.matmul %2, %3, %cst {dimension_numbers = #tpu.dot_dimension_numbers<[1], [0], [0], [1], [0, 0, 1, 1], [], []>} : vector<16x192xbf16>, vector<192x32xbf16>, vector<16x32xf32> -> vector<16x32xf32>
    %c0_4 = arith.constant 0 : index
    %c0_5 = arith.constant 0 : index
    %5 = vector.load %arg4[%c0_4, %c0_5] : memref<368x128xf32, #tpu.memory_space<vmem>>, vector<16x32xf32>
    %6 = arith.addf %4, %5 : vector<16x32xf32>
    %c16 = arith.constant 16 : index
    %c0_6 = arith.constant 0 : index
    %7 = vector.load %arg4[%c16, %c0_6] : memref<368x128xf32, #tpu.memory_space<vmem>>, vector<16x64xf32>
    %c208 = arith.constant 208 : index
    %c0_7 = arith.constant 0 : index
    %8 = vector.load %arg4[%c208, %c0_7] : memref<368x128xf32, #tpu.memory_space<vmem>>, vector<1x32xf32>
    %c216 = arith.constant 216 : index
    %c0_8 = arith.constant 0 : index
    %9 = vector.load %arg4[%c216, %c0_8] : memref<368x128xf32, #tpu.memory_space<vmem>>, vector<1x32xf32>
    %cst_9 = arith.constant dense<0.000000e+00> : vector<16xf32>
    %10 = vector.multi_reduction <add>, %6, %cst_9 [1] : vector<16x32xf32> to vector<16xf32>
    %11 = vector.shape_cast %10 : vector<16xf32> to vector<16x1xf32>
    %cst_10 = arith.constant 3.200000e+01 : f32
    %12 = vector.broadcast %cst_10 : f32 to vector<16x1xf32>
    %13 = arith.divf %11, %12 : vector<16x1xf32>
    %14 = vector.broadcast %13 : vector<16x1xf32> to vector<16x32xf32>
    %15 = arith.subf %6, %14 : vector<16x32xf32>
    %16 = arith.mulf %15, %15 : vector<16x32xf32>
    %cst_11 = arith.constant dense<0.000000e+00> : vector<16xf32>
    %17 = vector.multi_reduction <add>, %16, %cst_11 [1] : vector<16x32xf32> to vector<16xf32>
    %18 = vector.shape_cast %17 : vector<16xf32> to vector<16x1xf32>
    %cst_12 = arith.constant 3.200000e+01 : f32
    %19 = vector.broadcast %cst_12 : f32 to vector<16x1xf32>
    %20 = arith.divf %18, %19 : vector<16x1xf32>
    %cst_13 = arith.constant 9.99999997E-7 : f32
    %21 = vector.broadcast %cst_13 : f32 to vector<16x1xf32>
    %22 = arith.addf %20, %21 : vector<16x1xf32>
    %23 = math.rsqrt %22 : vector<16x1xf32>
    %24 = vector.broadcast %23 : vector<16x1xf32> to vector<16x32xf32>
    %25 = arith.mulf %15, %24 : vector<16x32xf32>
    %26 = vector.broadcast %8 : vector<1x32xf32> to vector<16x32xf32>
    %27 = arith.mulf %25, %26 : vector<16x32xf32>
    %28 = vector.broadcast %9 : vector<1x32xf32> to vector<16x32xf32>
    %29 = arith.addf %27, %28 : vector<16x32xf32>
    %30 = arith.truncf %29 : vector<16x32xf32> to vector<16x32xbf16>
    %c192 = arith.constant 192 : index
    %c0_14 = arith.constant 0 : index
    %31 = vector.load %arg3[%c192, %c0_14] : memref<928x128xbf16, #tpu.memory_space<vmem>>, vector<32x32xbf16>
    %c184 = arith.constant 184 : index
    %c0_15 = arith.constant 0 : index
    %32 = vector.load %arg4[%c184, %c0_15] : memref<368x128xf32, #tpu.memory_space<vmem>>, vector<1x32xf32>
    %c224 = arith.constant 224 : index
    %c0_16 = arith.constant 0 : index
    %33 = vector.load %arg3[%c224, %c0_16] : memref<928x128xbf16, #tpu.memory_space<vmem>>, vector<32x64xbf16>
    %c192_17 = arith.constant 192 : index
    %c0_18 = arith.constant 0 : index
    %34 = vector.load %arg4[%c192_17, %c0_18] : memref<368x128xf32, #tpu.memory_space<vmem>>, vector<1x64xf32>
    %c256 = arith.constant 256 : index
    %c0_19 = arith.constant 0 : index
    %35 = vector.load %arg3[%c256, %c0_19] : memref<928x128xbf16, #tpu.memory_space<vmem>>, vector<32x32xbf16>
    %c200 = arith.constant 200 : index
    %c0_20 = arith.constant 0 : index
    %36 = vector.load %arg4[%c200, %c0_20] : memref<368x128xf32, #tpu.memory_space<vmem>>, vector<1x32xf32>
    %cst_21 = arith.constant dense<0.000000e+00> : vector<16x32xf32>
    %37 = tpu.matmul %30, %31, %cst_21 {dimension_numbers = #tpu.dot_dimension_numbers<[1], [0], [0], [1], [0, 0, 1, 1], [], []>} : vector<16x32xbf16>, vector<32x32xbf16>, vector<16x32xf32> -> vector<16x32xf32>
    %38 = vector.broadcast %32 : vector<1x32xf32> to vector<16x32xf32>
    %39 = arith.addf %37, %38 : vector<16x32xf32>
    %cst_22 = arith.constant dense<0.000000e+00> : vector<16x64xf32>
    %40 = tpu.matmul %30, %33, %cst_22 {dimension_numbers = #tpu.dot_dimension_numbers<[1], [0], [0], [1], [0, 0, 1, 1], [], []>} : vector<16x32xbf16>, vector<32x64xbf16>, vector<16x64xf32> -> vector<16x64xf32>
    %41 = vector.broadcast %34 : vector<1x64xf32> to vector<16x64xf32>
    %42 = arith.addf %40, %41 : vector<16x64xf32>
    %43 = vector.extract_strided_slice %42 {offsets = [0, 0], sizes = [16, 32], strides = [1, 1]} : vector<16x64xf32> to vector<16x32xf32>
    %44 = vector.extract_strided_slice %42 {offsets = [0, 32], sizes = [16, 32], strides = [1, 1]} : vector<16x64xf32> to vector<16x32xf32>
    %45 = tpu.concatenate %43, %43, %43, %43 in 0 : vector<16x32xf32>, vector<16x32xf32>, vector<16x32xf32>, vector<16x32xf32> -> vector<64x32xf32>
    %46 = arith.mulf %45, %0 : vector<64x32xf32>
    %47 = arith.truncf %46 : vector<64x32xf32> to vector<64x32xbf16>
    %48 = tpu.concatenate %44, %44, %44, %44 in 0 : vector<16x32xf32>, vector<16x32xf32>, vector<16x32xf32>, vector<16x32xf32> -> vector<64x32xf32>
    %49 = arith.mulf %48, %0 : vector<64x32xf32>
    %50 = arith.truncf %49 : vector<64x32xf32> to vector<64x32xbf16>
    %51 = arith.truncf %39 : vector<16x32xf32> to vector<16x32xbf16>
    %cst_23 = arith.constant dense<0.000000e+00> : vector<16x64xf32>
    %52 = tpu.matmul %51, %47, %cst_23 {dimension_numbers = #tpu.dot_dimension_numbers<[1], [1], [0], [0], [0, 0, 1, 0], [], []>} : vector<16x32xbf16>, vector<64x32xbf16>, vector<16x64xf32> -> vector<16x64xf32>
    %cst_24 = arith.constant 0.353553385 : f32
    %53 = vector.broadcast %cst_24 : f32 to vector<16x64xf32>
    %54 = arith.mulf %52, %53 : vector<16x64xf32>
    %55 = arith.addf %54, %7 : vector<16x64xf32>
    %cst_25 = arith.constant dense<0xFF800000> : vector<16xf32>
    %56 = vector.multi_reduction <maximumf>, %55, %cst_25 [1] : vector<16x64xf32> to vector<16xf32>
    %57 = vector.shape_cast %56 : vector<16xf32> to vector<16x1xf32>
    %58 = vector.broadcast %57 : vector<16x1xf32> to vector<16x64xf32>
    %59 = arith.subf %55, %58 : vector<16x64xf32>
    %60 = math.exp %59 : vector<16x64xf32>
    %61 = arith.truncf %60 : vector<16x64xf32> to vector<16x64xbf16>
    %cst_26 = arith.constant dense<0.000000e+00> : vector<16x32xf32>
    %62 = tpu.matmul %61, %50, %cst_26 {dimension_numbers = #tpu.dot_dimension_numbers<[1], [0], [0], [1], [0, 0, 1, 1], [], []>} : vector<16x64xbf16>, vector<64x32xbf16>, vector<16x32xf32> -> vector<16x32xf32>
    %cst_27 = arith.constant dense<0.000000e+00> : vector<16x32xf32>
    %63 = tpu.matmul %61, %1, %cst_27 {dimension_numbers = #tpu.dot_dimension_numbers<[1], [0], [0], [1], [0, 0, 1, 1], [], []>} : vector<16x64xbf16>, vector<64x32xbf16>, vector<16x32xf32> -> vector<16x32xf32>
    %cst_28 = arith.constant 1.000000e-30 : f32
    %64 = vector.broadcast %cst_28 : f32 to vector<16x32xf32>
    %65 = arith.addf %63, %64 : vector<16x32xf32>
    %66 = tpu.reciprocal %65 {approx = true} : vector<16x32xf32> -> vector<16x32xf32>
    %67 = arith.mulf %62, %66 : vector<16x32xf32>
    %68 = arith.truncf %67 : vector<16x32xf32> to vector<16x32xbf16>
    %cst_29 = arith.constant dense<0.000000e+00> : vector<16x32xf32>
    %69 = tpu.matmul %68, %35, %cst_29 {dimension_numbers = #tpu.dot_dimension_numbers<[1], [0], [0], [1], [0, 0, 1, 1], [], []>} : vector<16x32xbf16>, vector<32x32xbf16>, vector<16x32xf32> -> vector<16x32xf32>
    %70 = vector.broadcast %36 : vector<1x32xf32> to vector<16x32xf32>
    %71 = arith.addf %69, %70 : vector<16x32xf32>
    %72 = arith.addf %6, %71 : vector<16x32xf32>
    %c224_30 = arith.constant 224 : index
    %c0_31 = arith.constant 0 : index
    %73 = vector.load %arg4[%c224_30, %c0_31] : memref<368x128xf32, #tpu.memory_space<vmem>>, vector<1x32xf32>
    %c232 = arith.constant 232 : index
    %c0_32 = arith.constant 0 : index
    %74 = vector.load %arg4[%c232, %c0_32] : memref<368x128xf32, #tpu.memory_space<vmem>>, vector<1x32xf32>
    %cst_33 = arith.constant dense<0.000000e+00> : vector<16xf32>
    %75 = vector.multi_reduction <add>, %72, %cst_33 [1] : vector<16x32xf32> to vector<16xf32>
    %76 = vector.shape_cast %75 : vector<16xf32> to vector<16x1xf32>
    %cst_34 = arith.constant 3.200000e+01 : f32
    %77 = vector.broadcast %cst_34 : f32 to vector<16x1xf32>
    %78 = arith.divf %76, %77 : vector<16x1xf32>
    %79 = vector.broadcast %78 : vector<16x1xf32> to vector<16x32xf32>
    %80 = arith.subf %72, %79 : vector<16x32xf32>
    %81 = arith.mulf %80, %80 : vector<16x32xf32>
    %cst_35 = arith.constant dense<0.000000e+00> : vector<16xf32>
    %82 = vector.multi_reduction <add>, %81, %cst_35 [1] : vector<16x32xf32> to vector<16xf32>
    %83 = vector.shape_cast %82 : vector<16xf32> to vector<16x1xf32>
    %cst_36 = arith.constant 3.200000e+01 : f32
    %84 = vector.broadcast %cst_36 : f32 to vector<16x1xf32>
    %85 = arith.divf %83, %84 : vector<16x1xf32>
    %cst_37 = arith.constant 9.99999997E-7 : f32
    %86 = vector.broadcast %cst_37 : f32 to vector<16x1xf32>
    %87 = arith.addf %85, %86 : vector<16x1xf32>
    %88 = math.rsqrt %87 : vector<16x1xf32>
    %89 = vector.broadcast %88 : vector<16x1xf32> to vector<16x32xf32>
    %90 = arith.mulf %80, %89 : vector<16x32xf32>
    %91 = vector.broadcast %73 : vector<1x32xf32> to vector<16x32xf32>
    %92 = arith.mulf %90, %91 : vector<16x32xf32>
    %93 = vector.broadcast %74 : vector<1x32xf32> to vector<16x32xf32>
    %94 = arith.addf %92, %93 : vector<16x32xf32>
    %95 = arith.truncf %94 : vector<16x32xf32> to vector<16x32xbf16>
    %c288 = arith.constant 288 : index
    %c0_38 = arith.constant 0 : index
    %96 = vector.load %arg3[%c288, %c0_38] : memref<928x128xbf16, #tpu.memory_space<vmem>>, vector<32x128xbf16>
    %c240 = arith.constant 240 : index
    %c0_39 = arith.constant 0 : index
    %97 = vector.load %arg4[%c240, %c0_39] : memref<368x128xf32, #tpu.memory_space<vmem>>, vector<1x128xf32>
    %c320 = arith.constant 320 : index
    %c0_40 = arith.constant 0 : index
    %98 = vector.load %arg3[%c320, %c0_40] : memref<928x128xbf16, #tpu.memory_space<vmem>>, vector<128x32xbf16>
    %c248 = arith.constant 248 : index
    %c0_41 = arith.constant 0 : index
    %99 = vector.load %arg4[%c248, %c0_41] : memref<368x128xf32, #tpu.memory_space<vmem>>, vector<1x32xf32>
    %cst_42 = arith.constant dense<0.000000e+00> : vector<16x128xf32>
    %100 = tpu.matmul %95, %96, %cst_42 {dimension_numbers = #tpu.dot_dimension_numbers<[1], [0], [0], [1], [0, 0, 1, 1], [], []>} : vector<16x32xbf16>, vector<32x128xbf16>, vector<16x128xf32> -> vector<16x128xf32>
    %101 = vector.broadcast %97 : vector<1x128xf32> to vector<16x128xf32>
    %102 = arith.addf %100, %101 : vector<16x128xf32>
    %103 = arith.mulf %102, %102 : vector<16x128xf32>
    %104 = arith.mulf %102, %103 : vector<16x128xf32>
    %cst_43 = arith.constant 4.471500e-02 : f32
    %105 = vector.broadcast %cst_43 : f32 to vector<16x128xf32>
    %106 = arith.mulf %105, %104 : vector<16x128xf32>
    %107 = arith.addf %102, %106 : vector<16x128xf32>
    %cst_44 = arith.constant 0.797884583 : f32
    %108 = vector.broadcast %cst_44 : f32 to vector<16x128xf32>
    %109 = arith.mulf %108, %107 : vector<16x128xf32>
    %110 = math.tanh %109 : vector<16x128xf32>
    %cst_45 = arith.constant 1.000000e+00 : f32
    %111 = vector.broadcast %cst_45 : f32 to vector<16x128xf32>
    %112 = arith.addf %111, %110 : vector<16x128xf32>
    %cst_46 = arith.constant 5.000000e-01 : f32
    %113 = vector.broadcast %cst_46 : f32 to vector<16x128xf32>
    %114 = arith.mulf %113, %112 : vector<16x128xf32>
    %115 = arith.mulf %102, %114 : vector<16x128xf32>
    %116 = arith.truncf %115 : vector<16x128xf32> to vector<16x128xbf16>
    %cst_47 = arith.constant dense<0.000000e+00> : vector<16x32xf32>
    %117 = tpu.matmul %116, %98, %cst_47 {dimension_numbers = #tpu.dot_dimension_numbers<[1], [0], [0], [1], [0, 0, 1, 1], [], []>} : vector<16x128xbf16>, vector<128x32xbf16>, vector<16x32xf32> -> vector<16x32xf32>
    %118 = vector.broadcast %99 : vector<1x32xf32> to vector<16x32xf32>
    %119 = arith.addf %117, %118 : vector<16x32xf32>
    %120 = arith.addf %72, %119 : vector<16x32xf32>
    %c128 = arith.constant 128 : index
    %c0_48 = arith.constant 0 : index
    %121 = vector.load %arg4[%c128, %c0_48] : memref<368x128xf32, #tpu.memory_space<vmem>>, vector<1x32xf32>
    %c136 = arith.constant 136 : index
    %c0_49 = arith.constant 0 : index
    %122 = vector.load %arg4[%c136, %c0_49] : memref<368x128xf32, #tpu.memory_space<vmem>>, vector<1x32xf32>
    %cst_50 = arith.constant dense<0.000000e+00> : vector<16xf32>
    %123 = vector.multi_reduction <add>, %120, %cst_50 [1] : vector<16x32xf32> to vector<16xf32>
    %124 = vector.shape_cast %123 : vector<16xf32> to vector<16x1xf32>
    %cst_51 = arith.constant 3.200000e+01 : f32
    %125 = vector.broadcast %cst_51 : f32 to vector<16x1xf32>
    %126 = arith.divf %124, %125 : vector<16x1xf32>
    %127 = vector.broadcast %126 : vector<16x1xf32> to vector<16x32xf32>
    %128 = arith.subf %120, %127 : vector<16x32xf32>
    %129 = arith.mulf %128, %128 : vector<16x32xf32>
    %cst_52 = arith.constant dense<0.000000e+00> : vector<16xf32>
    %130 = vector.multi_reduction <add>, %129, %cst_52 [1] : vector<16x32xf32> to vector<16xf32>
    %131 = vector.shape_cast %130 : vector<16xf32> to vector<16x1xf32>
    %cst_53 = arith.constant 3.200000e+01 : f32
    %132 = vector.broadcast %cst_53 : f32 to vector<16x1xf32>
    %133 = arith.divf %131, %132 : vector<16x1xf32>
    %cst_54 = arith.constant 9.99999997E-7 : f32
    %134 = vector.broadcast %cst_54 : f32 to vector<16x1xf32>
    %135 = arith.addf %133, %134 : vector<16x1xf32>
    %136 = math.rsqrt %135 : vector<16x1xf32>
    %137 = vector.broadcast %136 : vector<16x1xf32> to vector<16x32xf32>
    %138 = arith.mulf %128, %137 : vector<16x32xf32>
    %139 = vector.broadcast %121 : vector<1x32xf32> to vector<16x32xf32>
    %140 = arith.mulf %138, %139 : vector<16x32xf32>
    %141 = vector.broadcast %122 : vector<1x32xf32> to vector<16x32xf32>
    %142 = arith.addf %140, %141 : vector<16x32xf32>
    %143 = arith.truncf %142 : vector<16x32xf32> to vector<16x32xbf16>
    %c448 = arith.constant 448 : index
    %c0_55 = arith.constant 0 : index
    %144 = vector.load %arg3[%c448, %c0_55] : memref<928x128xbf16, #tpu.memory_space<vmem>>, vector<128x32xbf16>
    %c0_56 = arith.constant 0 : index
    %c0_57 = arith.constant 0 : index
    %145 = vector.load %arg1[%c0_56, %c0_57] : memref<16x128xbf16, #tpu.memory_space<vmem>>, vector<16x128xbf16>
    %cst_58 = arith.constant dense<0.000000e+00> : vector<16x32xf32>
    %146 = tpu.matmul %145, %144, %cst_58 {dimension_numbers = #tpu.dot_dimension_numbers<[1], [0], [0], [1], [0, 0, 1, 1], [], []>} : vector<16x128xbf16>, vector<128x32xbf16>, vector<16x32xf32> -> vector<16x32xf32>
    %c144 = arith.constant 144 : index
    %c0_59 = arith.constant 0 : index
    %147 = vector.load %arg4[%c144, %c0_59] : memref<368x128xf32, #tpu.memory_space<vmem>>, vector<16x32xf32>
    %148 = arith.addf %146, %147 : vector<16x32xf32>
    %c160 = arith.constant 160 : index
    %c0_60 = arith.constant 0 : index
    %149 = vector.load %arg4[%c160, %c0_60] : memref<368x128xf32, #tpu.memory_space<vmem>>, vector<1x32xf32>
    %c168 = arith.constant 168 : index
    %c0_61 = arith.constant 0 : index
    %150 = vector.load %arg4[%c168, %c0_61] : memref<368x128xf32, #tpu.memory_space<vmem>>, vector<1x32xf32>
    %cst_62 = arith.constant dense<0.000000e+00> : vector<16xf32>
    %151 = vector.multi_reduction <add>, %148, %cst_62 [1] : vector<16x32xf32> to vector<16xf32>
    %152 = vector.shape_cast %151 : vector<16xf32> to vector<16x1xf32>
    %cst_63 = arith.constant 3.200000e+01 : f32
    %153 = vector.broadcast %cst_63 : f32 to vector<16x1xf32>
    %154 = arith.divf %152, %153 : vector<16x1xf32>
    %155 = vector.broadcast %154 : vector<16x1xf32> to vector<16x32xf32>
    %156 = arith.subf %148, %155 : vector<16x32xf32>
    %157 = arith.mulf %156, %156 : vector<16x32xf32>
    %cst_64 = arith.constant dense<0.000000e+00> : vector<16xf32>
    %158 = vector.multi_reduction <add>, %157, %cst_64 [1] : vector<16x32xf32> to vector<16xf32>
    %159 = vector.shape_cast %158 : vector<16xf32> to vector<16x1xf32>
    %cst_65 = arith.constant 3.200000e+01 : f32
    %160 = vector.broadcast %cst_65 : f32 to vector<16x1xf32>
    %161 = arith.divf %159, %160 : vector<16x1xf32>
    %cst_66 = arith.constant 9.99999996E-13 : f32
    %162 = vector.broadcast %cst_66 : f32 to vector<16x1xf32>
    %163 = arith.addf %161, %162 : vector<16x1xf32>
    %164 = math.rsqrt %163 : vector<16x1xf32>
    %165 = vector.broadcast %164 : vector<16x1xf32> to vector<16x32xf32>
    %166 = arith.mulf %156, %165 : vector<16x32xf32>
    %167 = vector.broadcast %149 : vector<1x32xf32> to vector<16x32xf32>
    %168 = arith.mulf %166, %167 : vector<16x32xf32>
    %169 = vector.broadcast %150 : vector<1x32xf32> to vector<16x32xf32>
    %170 = arith.addf %168, %169 : vector<16x32xf32>
    %c32 = arith.constant 32 : index
    %c0_67 = arith.constant 0 : index
    %171 = vector.load %arg4[%c32, %c0_67] : memref<368x128xf32, #tpu.memory_space<vmem>>, vector<16x64xf32>
    %c48 = arith.constant 48 : index
    %c0_68 = arith.constant 0 : index
    %172 = vector.load %arg4[%c48, %c0_68] : memref<368x128xf32, #tpu.memory_space<vmem>>, vector<16x64xf32>
    %173 = arith.truncf %170 : vector<16x32xf32> to vector<16x32xbf16>
    %c576 = arith.constant 576 : index
    %c0_69 = arith.constant 0 : index
    %174 = vector.load %arg3[%c576, %c0_69] : memref<928x128xbf16, #tpu.memory_space<vmem>>, vector<32x32xbf16>
    %c256_70 = arith.constant 256 : index
    %c0_71 = arith.constant 0 : index
    %175 = vector.load %arg4[%c256_70, %c0_71] : memref<368x128xf32, #tpu.memory_space<vmem>>, vector<1x32xf32>
    %c608 = arith.constant 608 : index
    %c0_72 = arith.constant 0 : index
    %176 = vector.load %arg3[%c608, %c0_72] : memref<928x128xbf16, #tpu.memory_space<vmem>>, vector<32x64xbf16>
    %c264 = arith.constant 264 : index
    %c0_73 = arith.constant 0 : index
    %177 = vector.load %arg4[%c264, %c0_73] : memref<368x128xf32, #tpu.memory_space<vmem>>, vector<1x64xf32>
    %c640 = arith.constant 640 : index
    %c0_74 = arith.constant 0 : index
    %178 = vector.load %arg3[%c640, %c0_74] : memref<928x128xbf16, #tpu.memory_space<vmem>>, vector<32x32xbf16>
    %c272 = arith.constant 272 : index
    %c0_75 = arith.constant 0 : index
    %179 = vector.load %arg4[%c272, %c0_75] : memref<368x128xf32, #tpu.memory_space<vmem>>, vector<1x32xf32>
    %cst_76 = arith.constant dense<0.000000e+00> : vector<16x32xf32>
    %180 = tpu.matmul %173, %174, %cst_76 {dimension_numbers = #tpu.dot_dimension_numbers<[1], [0], [0], [1], [0, 0, 1, 1], [], []>} : vector<16x32xbf16>, vector<32x32xbf16>, vector<16x32xf32> -> vector<16x32xf32>
    %181 = vector.broadcast %175 : vector<1x32xf32> to vector<16x32xf32>
    %182 = arith.addf %180, %181 : vector<16x32xf32>
    %cst_77 = arith.constant dense<0.000000e+00> : vector<16x64xf32>
    %183 = tpu.matmul %173, %176, %cst_77 {dimension_numbers = #tpu.dot_dimension_numbers<[1], [0], [0], [1], [0, 0, 1, 1], [], []>} : vector<16x32xbf16>, vector<32x64xbf16>, vector<16x64xf32> -> vector<16x64xf32>
    %184 = vector.broadcast %177 : vector<1x64xf32> to vector<16x64xf32>
    %185 = arith.addf %183, %184 : vector<16x64xf32>
    %186 = vector.extract_strided_slice %185 {offsets = [0, 0], sizes = [16, 32], strides = [1, 1]} : vector<16x64xf32> to vector<16x32xf32>
    %187 = vector.extract_strided_slice %185 {offsets = [0, 32], sizes = [16, 32], strides = [1, 1]} : vector<16x64xf32> to vector<16x32xf32>
    %188 = tpu.concatenate %186, %186, %186, %186 in 0 : vector<16x32xf32>, vector<16x32xf32>, vector<16x32xf32>, vector<16x32xf32> -> vector<64x32xf32>
    %189 = arith.mulf %188, %0 : vector<64x32xf32>
    %190 = arith.truncf %189 : vector<64x32xf32> to vector<64x32xbf16>
    %191 = tpu.concatenate %187, %187, %187, %187 in 0 : vector<16x32xf32>, vector<16x32xf32>, vector<16x32xf32>, vector<16x32xf32> -> vector<64x32xf32>
    %192 = arith.mulf %191, %0 : vector<64x32xf32>
    %193 = arith.truncf %192 : vector<64x32xf32> to vector<64x32xbf16>
    %194 = arith.truncf %182 : vector<16x32xf32> to vector<16x32xbf16>
    %cst_78 = arith.constant dense<0.000000e+00> : vector<16x64xf32>
    %195 = tpu.matmul %194, %190, %cst_78 {dimension_numbers = #tpu.dot_dimension_numbers<[1], [1], [0], [0], [0, 0, 1, 0], [], []>} : vector<16x32xbf16>, vector<64x32xbf16>, vector<16x64xf32> -> vector<16x64xf32>
    %cst_79 = arith.constant 0.353553385 : f32
    %196 = vector.broadcast %cst_79 : f32 to vector<16x64xf32>
    %197 = arith.mulf %195, %196 : vector<16x64xf32>
    %198 = arith.addf %197, %171 : vector<16x64xf32>
    %cst_80 = arith.constant dense<0xFF800000> : vector<16xf32>
    %199 = vector.multi_reduction <maximumf>, %198, %cst_80 [1] : vector<16x64xf32> to vector<16xf32>
    %200 = vector.shape_cast %199 : vector<16xf32> to vector<16x1xf32>
    %201 = vector.broadcast %200 : vector<16x1xf32> to vector<16x64xf32>
    %202 = arith.subf %198, %201 : vector<16x64xf32>
    %203 = math.exp %202 : vector<16x64xf32>
    %204 = arith.truncf %203 : vector<16x64xf32> to vector<16x64xbf16>
    %cst_81 = arith.constant dense<0.000000e+00> : vector<16x32xf32>
    %205 = tpu.matmul %204, %193, %cst_81 {dimension_numbers = #tpu.dot_dimension_numbers<[1], [0], [0], [1], [0, 0, 1, 1], [], []>} : vector<16x64xbf16>, vector<64x32xbf16>, vector<16x32xf32> -> vector<16x32xf32>
    %cst_82 = arith.constant dense<0.000000e+00> : vector<16x32xf32>
    %206 = tpu.matmul %204, %1, %cst_82 {dimension_numbers = #tpu.dot_dimension_numbers<[1], [0], [0], [1], [0, 0, 1, 1], [], []>} : vector<16x64xbf16>, vector<64x32xbf16>, vector<16x32xf32> -> vector<16x32xf32>
    %cst_83 = arith.constant 1.000000e-30 : f32
    %207 = vector.broadcast %cst_83 : f32 to vector<16x32xf32>
    %208 = arith.addf %206, %207 : vector<16x32xf32>
    %209 = tpu.reciprocal %208 {approx = true} : vector<16x32xf32> -> vector<16x32xf32>
    %210 = arith.mulf %205, %209 : vector<16x32xf32>
    %211 = arith.truncf %210 : vector<16x32xf32> to vector<16x32xbf16>
    %cst_84 = arith.constant dense<0.000000e+00> : vector<16x32xf32>
    %212 = tpu.matmul %211, %178, %cst_84 {dimension_numbers = #tpu.dot_dimension_numbers<[1], [0], [0], [1], [0, 0, 1, 1], [], []>} : vector<16x32xbf16>, vector<32x32xbf16>, vector<16x32xf32> -> vector<16x32xf32>
    %213 = vector.broadcast %179 : vector<1x32xf32> to vector<16x32xf32>
    %214 = arith.addf %212, %213 : vector<16x32xf32>
    %215 = arith.addf %170, %214 : vector<16x32xf32>
    %c304 = arith.constant 304 : index
    %c0_85 = arith.constant 0 : index
    %216 = vector.load %arg4[%c304, %c0_85] : memref<368x128xf32, #tpu.memory_space<vmem>>, vector<1x32xf32>
    %c312 = arith.constant 312 : index
    %c0_86 = arith.constant 0 : index
    %217 = vector.load %arg4[%c312, %c0_86] : memref<368x128xf32, #tpu.memory_space<vmem>>, vector<1x32xf32>
    %cst_87 = arith.constant dense<0.000000e+00> : vector<16xf32>
    %218 = vector.multi_reduction <add>, %215, %cst_87 [1] : vector<16x32xf32> to vector<16xf32>
    %219 = vector.shape_cast %218 : vector<16xf32> to vector<16x1xf32>
    %cst_88 = arith.constant 3.200000e+01 : f32
    %220 = vector.broadcast %cst_88 : f32 to vector<16x1xf32>
    %221 = arith.divf %219, %220 : vector<16x1xf32>
    %222 = vector.broadcast %221 : vector<16x1xf32> to vector<16x32xf32>
    %223 = arith.subf %215, %222 : vector<16x32xf32>
    %224 = arith.mulf %223, %223 : vector<16x32xf32>
    %cst_89 = arith.constant dense<0.000000e+00> : vector<16xf32>
    %225 = vector.multi_reduction <add>, %224, %cst_89 [1] : vector<16x32xf32> to vector<16xf32>
    %226 = vector.shape_cast %225 : vector<16xf32> to vector<16x1xf32>
    %cst_90 = arith.constant 3.200000e+01 : f32
    %227 = vector.broadcast %cst_90 : f32 to vector<16x1xf32>
    %228 = arith.divf %226, %227 : vector<16x1xf32>
    %cst_91 = arith.constant 9.99999996E-13 : f32
    %229 = vector.broadcast %cst_91 : f32 to vector<16x1xf32>
    %230 = arith.addf %228, %229 : vector<16x1xf32>
    %231 = math.rsqrt %230 : vector<16x1xf32>
    %232 = vector.broadcast %231 : vector<16x1xf32> to vector<16x32xf32>
    %233 = arith.mulf %223, %232 : vector<16x32xf32>
    %234 = vector.broadcast %216 : vector<1x32xf32> to vector<16x32xf32>
    %235 = arith.mulf %233, %234 : vector<16x32xf32>
    %236 = vector.broadcast %217 : vector<1x32xf32> to vector<16x32xf32>
    %237 = arith.addf %235, %236 : vector<16x32xf32>
    %238 = arith.truncf %237 : vector<16x32xf32> to vector<16x32xbf16>
    %c672 = arith.constant 672 : index
    %c0_92 = arith.constant 0 : index
    %239 = vector.load %arg3[%c672, %c0_92] : memref<928x128xbf16, #tpu.memory_space<vmem>>, vector<32x32xbf16>
    %c280 = arith.constant 280 : index
    %c0_93 = arith.constant 0 : index
    %240 = vector.load %arg4[%c280, %c0_93] : memref<368x128xf32, #tpu.memory_space<vmem>>, vector<1x32xf32>
    %c704 = arith.constant 704 : index
    %c0_94 = arith.constant 0 : index
    %241 = vector.load %arg3[%c704, %c0_94] : memref<928x128xbf16, #tpu.memory_space<vmem>>, vector<32x64xbf16>
    %c288_95 = arith.constant 288 : index
    %c0_96 = arith.constant 0 : index
    %242 = vector.load %arg4[%c288_95, %c0_96] : memref<368x128xf32, #tpu.memory_space<vmem>>, vector<1x64xf32>
    %c736 = arith.constant 736 : index
    %c0_97 = arith.constant 0 : index
    %243 = vector.load %arg3[%c736, %c0_97] : memref<928x128xbf16, #tpu.memory_space<vmem>>, vector<32x32xbf16>
    %c296 = arith.constant 296 : index
    %c0_98 = arith.constant 0 : index
    %244 = vector.load %arg4[%c296, %c0_98] : memref<368x128xf32, #tpu.memory_space<vmem>>, vector<1x32xf32>
    %cst_99 = arith.constant dense<0.000000e+00> : vector<16x32xf32>
    %245 = tpu.matmul %238, %239, %cst_99 {dimension_numbers = #tpu.dot_dimension_numbers<[1], [0], [0], [1], [0, 0, 1, 1], [], []>} : vector<16x32xbf16>, vector<32x32xbf16>, vector<16x32xf32> -> vector<16x32xf32>
    %246 = vector.broadcast %240 : vector<1x32xf32> to vector<16x32xf32>
    %247 = arith.addf %245, %246 : vector<16x32xf32>
    %cst_100 = arith.constant dense<0.000000e+00> : vector<16x64xf32>
    %248 = tpu.matmul %143, %241, %cst_100 {dimension_numbers = #tpu.dot_dimension_numbers<[1], [0], [0], [1], [0, 0, 1, 1], [], []>} : vector<16x32xbf16>, vector<32x64xbf16>, vector<16x64xf32> -> vector<16x64xf32>
    %249 = vector.broadcast %242 : vector<1x64xf32> to vector<16x64xf32>
    %250 = arith.addf %248, %249 : vector<16x64xf32>
    %251 = vector.extract_strided_slice %250 {offsets = [0, 0], sizes = [16, 32], strides = [1, 1]} : vector<16x64xf32> to vector<16x32xf32>
    %252 = vector.extract_strided_slice %250 {offsets = [0, 32], sizes = [16, 32], strides = [1, 1]} : vector<16x64xf32> to vector<16x32xf32>
    %253 = tpu.concatenate %251, %251, %251, %251 in 0 : vector<16x32xf32>, vector<16x32xf32>, vector<16x32xf32>, vector<16x32xf32> -> vector<64x32xf32>
    %254 = arith.mulf %253, %0 : vector<64x32xf32>
    %255 = arith.truncf %254 : vector<64x32xf32> to vector<64x32xbf16>
    %256 = tpu.concatenate %252, %252, %252, %252 in 0 : vector<16x32xf32>, vector<16x32xf32>, vector<16x32xf32>, vector<16x32xf32> -> vector<64x32xf32>
    %257 = arith.mulf %256, %0 : vector<64x32xf32>
    %258 = arith.truncf %257 : vector<64x32xf32> to vector<64x32xbf16>
    %259 = arith.truncf %247 : vector<16x32xf32> to vector<16x32xbf16>
    %cst_101 = arith.constant dense<0.000000e+00> : vector<16x64xf32>
    %260 = tpu.matmul %259, %255, %cst_101 {dimension_numbers = #tpu.dot_dimension_numbers<[1], [1], [0], [0], [0, 0, 1, 0], [], []>} : vector<16x32xbf16>, vector<64x32xbf16>, vector<16x64xf32> -> vector<16x64xf32>
    %cst_102 = arith.constant 0.353553385 : f32
    %261 = vector.broadcast %cst_102 : f32 to vector<16x64xf32>
    %262 = arith.mulf %260, %261 : vector<16x64xf32>
    %263 = arith.addf %262, %172 : vector<16x64xf32>
    %cst_103 = arith.constant dense<0xFF800000> : vector<16xf32>
    %264 = vector.multi_reduction <maximumf>, %263, %cst_103 [1] : vector<16x64xf32> to vector<16xf32>
    %265 = vector.shape_cast %264 : vector<16xf32> to vector<16x1xf32>
    %266 = vector.broadcast %265 : vector<16x1xf32> to vector<16x64xf32>
    %267 = arith.subf %263, %266 : vector<16x64xf32>
    %268 = math.exp %267 : vector<16x64xf32>
    %269 = arith.truncf %268 : vector<16x64xf32> to vector<16x64xbf16>
    %cst_104 = arith.constant dense<0.000000e+00> : vector<16x32xf32>
    %270 = tpu.matmul %269, %258, %cst_104 {dimension_numbers = #tpu.dot_dimension_numbers<[1], [0], [0], [1], [0, 0, 1, 1], [], []>} : vector<16x64xbf16>, vector<64x32xbf16>, vector<16x32xf32> -> vector<16x32xf32>
    %cst_105 = arith.constant dense<0.000000e+00> : vector<16x32xf32>
    %271 = tpu.matmul %269, %1, %cst_105 {dimension_numbers = #tpu.dot_dimension_numbers<[1], [0], [0], [1], [0, 0, 1, 1], [], []>} : vector<16x64xbf16>, vector<64x32xbf16>, vector<16x32xf32> -> vector<16x32xf32>
    %cst_106 = arith.constant 1.000000e-30 : f32
    %272 = vector.broadcast %cst_106 : f32 to vector<16x32xf32>
    %273 = arith.addf %271, %272 : vector<16x32xf32>
    %274 = tpu.reciprocal %273 {approx = true} : vector<16x32xf32> -> vector<16x32xf32>
    %275 = arith.mulf %270, %274 : vector<16x32xf32>
    %276 = arith.truncf %275 : vector<16x32xf32> to vector<16x32xbf16>
    %cst_107 = arith.constant dense<0.000000e+00> : vector<16x32xf32>
    %277 = tpu.matmul %276, %243, %cst_107 {dimension_numbers = #tpu.dot_dimension_numbers<[1], [0], [0], [1], [0, 0, 1, 1], [], []>} : vector<16x32xbf16>, vector<32x32xbf16>, vector<16x32xf32> -> vector<16x32xf32>
    %278 = vector.broadcast %244 : vector<1x32xf32> to vector<16x32xf32>
    %279 = arith.addf %277, %278 : vector<16x32xf32>
    %280 = arith.addf %237, %279 : vector<16x32xf32>
    %c320_108 = arith.constant 320 : index
    %c0_109 = arith.constant 0 : index
    %281 = vector.load %arg4[%c320_108, %c0_109] : memref<368x128xf32, #tpu.memory_space<vmem>>, vector<1x32xf32>
    %c328 = arith.constant 328 : index
    %c0_110 = arith.constant 0 : index
    %282 = vector.load %arg4[%c328, %c0_110] : memref<368x128xf32, #tpu.memory_space<vmem>>, vector<1x32xf32>
    %cst_111 = arith.constant dense<0.000000e+00> : vector<16xf32>
    %283 = vector.multi_reduction <add>, %280, %cst_111 [1] : vector<16x32xf32> to vector<16xf32>
    %284 = vector.shape_cast %283 : vector<16xf32> to vector<16x1xf32>
    %cst_112 = arith.constant 3.200000e+01 : f32
    %285 = vector.broadcast %cst_112 : f32 to vector<16x1xf32>
    %286 = arith.divf %284, %285 : vector<16x1xf32>
    %287 = vector.broadcast %286 : vector<16x1xf32> to vector<16x32xf32>
    %288 = arith.subf %280, %287 : vector<16x32xf32>
    %289 = arith.mulf %288, %288 : vector<16x32xf32>
    %cst_113 = arith.constant dense<0.000000e+00> : vector<16xf32>
    %290 = vector.multi_reduction <add>, %289, %cst_113 [1] : vector<16x32xf32> to vector<16xf32>
    %291 = vector.shape_cast %290 : vector<16xf32> to vector<16x1xf32>
    %cst_114 = arith.constant 3.200000e+01 : f32
    %292 = vector.broadcast %cst_114 : f32 to vector<16x1xf32>
    %293 = arith.divf %291, %292 : vector<16x1xf32>
    %cst_115 = arith.constant 9.99999996E-13 : f32
    %294 = vector.broadcast %cst_115 : f32 to vector<16x1xf32>
    %295 = arith.addf %293, %294 : vector<16x1xf32>
    %296 = math.rsqrt %295 : vector<16x1xf32>
    %297 = vector.broadcast %296 : vector<16x1xf32> to vector<16x32xf32>
    %298 = arith.mulf %288, %297 : vector<16x32xf32>
    %299 = vector.broadcast %281 : vector<1x32xf32> to vector<16x32xf32>
    %300 = arith.mulf %298, %299 : vector<16x32xf32>
    %301 = vector.broadcast %282 : vector<1x32xf32> to vector<16x32xf32>
    %302 = arith.addf %300, %301 : vector<16x32xf32>
    %303 = arith.truncf %302 : vector<16x32xf32> to vector<16x32xbf16>
    %c768 = arith.constant 768 : index
    %c0_116 = arith.constant 0 : index
    %304 = vector.load %arg3[%c768, %c0_116] : memref<928x128xbf16, #tpu.memory_space<vmem>>, vector<32x128xbf16>
    %c352 = arith.constant 352 : index
    %c0_117 = arith.constant 0 : index
    %305 = vector.load %arg4[%c352, %c0_117] : memref<368x128xf32, #tpu.memory_space<vmem>>, vector<1x128xf32>
    %c800 = arith.constant 800 : index
    %c0_118 = arith.constant 0 : index
    %306 = vector.load %arg3[%c800, %c0_118] : memref<928x128xbf16, #tpu.memory_space<vmem>>, vector<128x32xbf16>
    %c360 = arith.constant 360 : index
    %c0_119 = arith.constant 0 : index
    %307 = vector.load %arg4[%c360, %c0_119] : memref<368x128xf32, #tpu.memory_space<vmem>>, vector<1x32xf32>
    %cst_120 = arith.constant dense<0.000000e+00> : vector<16x128xf32>
    %308 = tpu.matmul %303, %304, %cst_120 {dimension_numbers = #tpu.dot_dimension_numbers<[1], [0], [0], [1], [0, 0, 1, 1], [], []>} : vector<16x32xbf16>, vector<32x128xbf16>, vector<16x128xf32> -> vector<16x128xf32>
    %309 = vector.broadcast %305 : vector<1x128xf32> to vector<16x128xf32>
    %310 = arith.addf %308, %309 : vector<16x128xf32>
    %311 = arith.mulf %310, %310 : vector<16x128xf32>
    %312 = arith.mulf %310, %311 : vector<16x128xf32>
    %cst_121 = arith.constant 4.471500e-02 : f32
    %313 = vector.broadcast %cst_121 : f32 to vector<16x128xf32>
    %314 = arith.mulf %313, %312 : vector<16x128xf32>
    %315 = arith.addf %310, %314 : vector<16x128xf32>
    %cst_122 = arith.constant 0.797884583 : f32
    %316 = vector.broadcast %cst_122 : f32 to vector<16x128xf32>
    %317 = arith.mulf %316, %315 : vector<16x128xf32>
    %318 = math.tanh %317 : vector<16x128xf32>
    %cst_123 = arith.constant 1.000000e+00 : f32
    %319 = vector.broadcast %cst_123 : f32 to vector<16x128xf32>
    %320 = arith.addf %319, %318 : vector<16x128xf32>
    %cst_124 = arith.constant 5.000000e-01 : f32
    %321 = vector.broadcast %cst_124 : f32 to vector<16x128xf32>
    %322 = arith.mulf %321, %320 : vector<16x128xf32>
    %323 = arith.mulf %310, %322 : vector<16x128xf32>
    %324 = arith.truncf %323 : vector<16x128xf32> to vector<16x128xbf16>
    %cst_125 = arith.constant dense<0.000000e+00> : vector<16x32xf32>
    %325 = tpu.matmul %324, %306, %cst_125 {dimension_numbers = #tpu.dot_dimension_numbers<[1], [0], [0], [1], [0, 0, 1, 1], [], []>} : vector<16x128xbf16>, vector<128x32xbf16>, vector<16x32xf32> -> vector<16x32xf32>
    %326 = vector.broadcast %307 : vector<1x32xf32> to vector<16x32xf32>
    %327 = arith.addf %325, %326 : vector<16x32xf32>
    %328 = arith.addf %302, %327 : vector<16x32xf32>
    %c336 = arith.constant 336 : index
    %c0_126 = arith.constant 0 : index
    %329 = vector.load %arg4[%c336, %c0_126] : memref<368x128xf32, #tpu.memory_space<vmem>>, vector<1x32xf32>
    %c344 = arith.constant 344 : index
    %c0_127 = arith.constant 0 : index
    %330 = vector.load %arg4[%c344, %c0_127] : memref<368x128xf32, #tpu.memory_space<vmem>>, vector<1x32xf32>
    %cst_128 = arith.constant dense<0.000000e+00> : vector<16xf32>
    %331 = vector.multi_reduction <add>, %328, %cst_128 [1] : vector<16x32xf32> to vector<16xf32>
    %332 = vector.shape_cast %331 : vector<16xf32> to vector<16x1xf32>
    %cst_129 = arith.constant 3.200000e+01 : f32
    %333 = vector.broadcast %cst_129 : f32 to vector<16x1xf32>
    %334 = arith.divf %332, %333 : vector<16x1xf32>
    %335 = vector.broadcast %334 : vector<16x1xf32> to vector<16x32xf32>
    %336 = arith.subf %328, %335 : vector<16x32xf32>
    %337 = arith.mulf %336, %336 : vector<16x32xf32>
    %cst_130 = arith.constant dense<0.000000e+00> : vector<16xf32>
    %338 = vector.multi_reduction <add>, %337, %cst_130 [1] : vector<16x32xf32> to vector<16xf32>
    %339 = vector.shape_cast %338 : vector<16xf32> to vector<16x1xf32>
    %cst_131 = arith.constant 3.200000e+01 : f32
    %340 = vector.broadcast %cst_131 : f32 to vector<16x1xf32>
    %341 = arith.divf %339, %340 : vector<16x1xf32>
    %cst_132 = arith.constant 9.99999996E-13 : f32
    %342 = vector.broadcast %cst_132 : f32 to vector<16x1xf32>
    %343 = arith.addf %341, %342 : vector<16x1xf32>
    %344 = math.rsqrt %343 : vector<16x1xf32>
    %345 = vector.broadcast %344 : vector<16x1xf32> to vector<16x32xf32>
    %346 = arith.mulf %336, %345 : vector<16x32xf32>
    %347 = vector.broadcast %329 : vector<1x32xf32> to vector<16x32xf32>
    %348 = arith.mulf %346, %347 : vector<16x32xf32>
    %349 = vector.broadcast %330 : vector<1x32xf32> to vector<16x32xf32>
    %350 = arith.addf %348, %349 : vector<16x32xf32>
    %351 = arith.truncf %350 : vector<16x32xf32> to vector<16x32xbf16>
    %cst_133 = arith.constant dense<0.000000e+00> : vector<16x128xf32>
    %352 = tpu.matmul %351, %144, %cst_133 {dimension_numbers = #tpu.dot_dimension_numbers<[1], [1], [0], [0], [0, 0, 1, 0], [], []>} : vector<16x32xbf16>, vector<128x32xbf16>, vector<16x128xf32> -> vector<16x128xf32>
    %c176 = arith.constant 176 : index
    %c0_134 = arith.constant 0 : index
    %353 = vector.load %arg4[%c176, %c0_134] : memref<368x128xf32, #tpu.memory_space<vmem>>, vector<1x128xf32>
    %354 = vector.broadcast %353 : vector<1x128xf32> to vector<16x128xf32>
    %355 = arith.addf %352, %354 : vector<16x128xf32>
    %c0_135 = arith.constant 0 : index
    %c0_136 = arith.constant 0 : index
    %356 = vector.load %arg5[%c0_135, %c0_136] : memref<16x128xf32, #tpu.memory_space<vmem>>, vector<16x128xf32>
    tpu.vector_store %arg5[%c0_135, %c0_136], %355 {strides = array<i32>} : memref<16x128xf32, #tpu.memory_space<vmem>>, vector<16x128xf32>,
    %cst_137 = arith.constant dense<0xFF800000> : vector<16xf32>
    %357 = vector.multi_reduction <maximumf>, %355, %cst_137 [1] : vector<16x128xf32> to vector<16xf32>
    %358 = vector.shape_cast %357 : vector<16xf32> to vector<16x1xf32>
    %359 = vector.broadcast %358 : vector<16x1xf32> to vector<16x128xf32>
    %360 = arith.subf %355, %359 : vector<16x128xf32>
    %361 = math.exp %360 : vector<16x128xf32>
    %cst_138 = arith.constant dense<0.000000e+00> : vector<16xf32>
    %362 = vector.multi_reduction <add>, %361, %cst_138 [1] : vector<16x128xf32> to vector<16xf32>
    %363 = vector.shape_cast %362 : vector<16xf32> to vector<16x1xf32>
    %364 = math.log %363 : vector<16x1xf32>
    %365 = arith.addf %364, %358 : vector<16x1xf32>
    %c0_139 = arith.constant 0 : index
    %c0_140 = arith.constant 0 : index
    %366 = vector.load %arg2[%c0_139, %c0_140] : memref<16x128xf32, #tpu.memory_space<vmem>>, vector<16x128xf32>
    %cst_141 = arith.constant dense<0.000000e+00> : vector<16xf32>
    %367 = vector.multi_reduction <add>, %366, %cst_141 [1] : vector<16x128xf32> to vector<16xf32>
    %368 = vector.shape_cast %367 : vector<16xf32> to vector<16x1xf32>
    %369 = arith.mulf %365, %368 : vector<16x1xf32>
    %370 = vector.shape_cast %369 : vector<16x1xf32> to vector<1x16x1xf32>
    %cst_142 = arith.constant dense<0.000000e+00> : vector<1xf32>
    %371 = vector.multi_reduction <add>, %370, %cst_142 [1, 2] : vector<1x16x1xf32> to vector<1xf32>
    %372 = vector.shape_cast %371 : vector<1xf32> to vector<1x1x1xf32>
    %373 = vector.extract %372[0, 0, 0] : f32 from vector<1x1x1xf32>
    %374 = arith.mulf %355, %366 : vector<16x128xf32>
    %375 = vector.shape_cast %374 : vector<16x128xf32> to vector<1x16x128xf32>
    %cst_143 = arith.constant dense<0.000000e+00> : vector<1xf32>
    %376 = vector.multi_reduction <add>, %375, %cst_143 [1, 2] : vector<1x16x128xf32> to vector<1xf32>
    %377 = vector.shape_cast %376 : vector<1xf32> to vector<1x1x1xf32>
    %378 = vector.extract %377[0, 0, 0] : f32 from vector<1x1x1xf32>
    %379 = arith.subf %373, %378 : f32
    %cst_144 = arith.constant 0.0714285746 : f32
    %380 = arith.mulf %379, %cst_144 : f32
    %c0_145 = arith.constant 0 : index
    %c0_146 = arith.constant 0 : index
    %381 = memref.load %arg6[%c0_145, %c0_146] : memref<1x1xf32, #tpu.memory_space<smem>>
    memref.store %380, %arg6[%c0_145, %c0_146] : memref<1x1xf32, #tpu.memory_space<smem>>
    return
  }
}

</mosaic_0001>

<llo_original>
// kernel: eq.15
$region0: #{eq.15}
  %s0 = inlined_call_operand.vmem [shape: s32[2,8], index: 0, kind: input, shape index: {}]
  %s1 = inlined_call_operand.vmem [shape: s32[16], index: 1, kind: output, shape index: {}]
  $region1: #{eq.15} parent=0
    #allocation0 [shape = 'u8[4096]{0}', space=vmem, size = 0x1000, scoped, tag = 'scoped mem for output reshape']
    #allocation1 [shape = 'u8[4096]{0}', space=vmem, size = 0x1000, scoped, tag = 'scoped mem for input reshape']
    %s3 = ssub.s32 4, 1
    %v4 = vld [vmem:[%s0] sm:%s3]
    %5 = vst [vmem:[#allocation1] sm:%s3] %v4
    %v6 = vld [vmem:[#allocation1] sm:$0x1]
    %vm7 = vcmask 64512
    %8 = vst.msk [vmem:[#allocation0] sm:$0x1] %vm7, %v6
    %s9 = scalar_lea.vmem [#allocation1], 1
    %v10 = vld [vmem:[%s9] sm:$0x1]
    %11 = vrot.lane.b32.xlu0 %v10, 8
    %v12 = vpop.permute.xlu0 %11
    %vm13 = vcmask 130112
    %14 = vst.msk [vmem:[#allocation0] sm:$0x1] %vm13, %v12
    %s16 = ssub.s32 2, 1
    %v17 = vld [vmem:[#allocation0] sm:%s16]
    %s19 = ssub.s32 2, 1
    %20 = vst [vmem:[%s1] sm:%s19] %v17

// kernel: blip_loss.1
$region0: #{blip_loss.1}
  #allocation0 [shape = 'u32[]', space=smem, size = 0x4, offset = 0x4, fixed_abs, tag = 'smem constant byte address 0x4 - core index']
  #allocation1 [shape = 'u32[72,128]{1,0:T(1,128)}', space=vmem, size = 0x9000, scoped, tag = 'internal scratch']
  %s0 = inlined_call_operand.vmem [shape: bf16[16,192], index: 0, kind: input, shape index: {}]
  %s1 = inlined_call_operand.vmem [shape: bf16[16,128], index: 1, kind: input, shape index: {}]
  %s2 = inlined_call_operand.vmem [shape: f32[16,128], index: 2, kind: input, shape index: {}]
  %s3 = inlined_call_operand.vmem [shape: bf16[928,128], index: 3, kind: input, shape index: {}]
  %s4 = inlined_call_operand.hbm [shape: f32[368,128], index: 4, kind: input, shape index: {}]
  %s5 = inlined_call_operand.vmem [shape: f32[16,128], index: 5, kind: output, shape index: {0}]
  %s6 = inlined_call_operand.hbm [shape: f32[1,1], index: 6, kind: output, shape index: {1}]
  %7 = xla_tuple %s5, %s6
  %s8 = sld [smem:[#allocation0]]
  $region42: #{blip_loss.1} parent=0
    _
  %s10 = ssub.s32 1, %s8
  %s11 = scalar_select 0, %s10, %s8
  $region1: #{blip_loss.1} parent=0
    #allocation2 [shape = 'u8[188416]{0}', space=vmem, size = 0x2e000, scoped, tag = 'input window, operand 4, single buffered']
    #allocation3 [shape = 's32[1]{0}', space=sflag, size = 0x4, scoped, tag = 'scoped memory for blip_loss.1']
    #allocation4 [shape = 's32[1]{0}', space=sflag, size = 0x4, scoped, tag = 'scoped memory for blip_loss.1']
    #allocation5 [shape = 'u8[512]{0}', space=smem, size = 0x200, scoped, tag = 'output window, operand 1, single buffered']
    %12 = vsyncpa [#allocation3], 0
    %13 = vsyncpa [#allocation4], 0
    // Predicated region
    $region2: #{blip_loss.1} parent=1 // pred_check
      _
    $region3: #{blip_loss.1} parent=1 // pred_check_branch
      %15 = sbr.rel (0) target = $region5
    $region4: #{blip_loss.1} parent=1 // pred_region
      _
    $region5: #{blip_loss.1} parent=1 // pred_fallthru
      _
    // Predicated region
    $region6: #{blip_loss.1} parent=1 // pred_check
      _
    $region7: #{blip_loss.1} parent=1 // pred_check_branch
      %17 = sbr.rel (0) target = $region9
    $region8: #{blip_loss.1} parent=1 // pred_region
      _
    $region9: #{blip_loss.1} parent=1 // pred_fallthru
      _
    // Predicated region
    $region10: #{blip_loss.1} parent=1 // pred_check
      _
    $region11: #{blip_loss.1} parent=1 // pred_check_branch
      %19 = sbr.rel (0) target = $region13
    $region12: #{blip_loss.1} parent=1 // pred_region
      _
    $region13: #{blip_loss.1} parent=1 // pred_fallthru
      _
    // Predicated region
    $region14: #{blip_loss.1} parent=1 // pred_check
      _
    $region15: #{blip_loss.1} parent=1 // pred_check_branch
      %21 = sbr.rel (0) target = $region17
    $region16: #{blip_loss.1} parent=1 // pred_region
      _
    $region17: #{blip_loss.1} parent=1 // pred_fallthru
      _
    // Predicated region
    $region18: #{blip_loss.1} parent=1 // pred_check
      _
    $region19: #{blip_loss.1} parent=1 // pred_check_branch
      %23 = sbr.rel (0) target = $region21
    $region20: #{blip_loss.1} parent=1 // pred_region
      %25 = vsyncadd [#allocation3], 0
      %s26 = sshll.u32 %s4, 4
      %s27 = int_to_ptr.hbm [resolvable:$true] %s26
      %s28 = sshll.u32 [#allocation2], 4
      %s29 = int_to_ptr.vmem [resolvable:$true] %s28
      %34 = dma.hbm_to_vmem [thread:$0]  %s27, 5888, %s29, [#allocation3], 128, 128, 8
    $region21: #{blip_loss.1} parent=1 // pred_fallthru
      _
    // Predicated region
    $region22: #{blip_loss.1} parent=1 // pred_check
      _
    $region23: #{blip_loss.1} parent=1 // pred_check_branch
      %36 = sbr.rel (0) target = $region25
    $region24: #{blip_loss.1} parent=1 // pred_region
      %38 = dma.done [#allocation3], 5888
    $region25: #{blip_loss.1} parent=1 // pred_fallthru
      _
    %v40 = vld [vmem:[#allocation2 + $0x40] sm:$0xff]
    %v41 = vld [vmem:[#allocation2 + $0x48] sm:$0xff]
    %v42 = vld [vmem:[#allocation2 + $0x50] sm:$0xff]
    %v43 = vld [vmem:[#allocation2 + $0x58] sm:$0xff]
    %v44 = vld [vmem:[#allocation2 + $0x60] sm:$0xff]
    %v45 = vld [vmem:[#allocation2 + $0x68] sm:$0xff]
    %v46 = vld [vmem:[#allocation2 + $0x70] sm:$0xff]
    %v47 = vld [vmem:[#allocation2 + $0x78] sm:$0xff]
    %v48 = vpack.c.bf16 %v41, %v40
    %v49 = vpack.c.bf16 %v43, %v42
    %v50 = vpack.c.bf16 %v45, %v44
    %v51 = vpack.c.bf16 %v47, %v46
    %v52 = vld [vmem:[%s0] sm:$0xff]
    %v53 = vld [vmem:[%s0 + $0x8] sm:$0xff]
    %v54 = vld [vmem:[%s3] sm:$0xf]
    %v55 = vld [vmem:[%s3 + $0x4] sm:$0xf]
    %v56 = vld [vmem:[%s3 + $0x8] sm:$0xf]
    %v57 = vld [vmem:[%s3 + $0xc] sm:$0xf]
    %v58 = vld [vmem:[%s3 + $0x10] sm:$0xf]
    %v59 = vld [vmem:[%s3 + $0x14] sm:$0xf]
    %v60 = vld [vmem:[%s3 + $0x18] sm:$0xf]
    %v61 = vld [vmem:[%s3 + $0x1c] sm:$0xf]
    %v62 = vld [vmem:[%s3 + $0x20] sm:$0xf]
    %v63 = vld [vmem:[%s3 + $0x24] sm:$0xf]
    %v64 = vld [vmem:[%s3 + $0x28] sm:$0xf]
    %v65 = vld [vmem:[%s3 + $0x2c] sm:$0xf]
    %v66 = vld [vmem:[%s3 + $0x30] sm:$0xf]
    %v67 = vld [vmem:[%s3 + $0x34] sm:$0xf]
    %v68 = vld [vmem:[%s3 + $0x38] sm:$0xf]
    %v69 = vld [vmem:[%s3 + $0x3c] sm:$0xf]
    %v70 = vld [vmem:[%s3 + $0x40] sm:$0xf]
    %v71 = vld [vmem:[%s3 + $0x44] sm:$0xf]
    %v72 = vld [vmem:[%s3 + $0x48] sm:$0xf]
    %v73 = vld [vmem:[%s3 + $0x4c] sm:$0xf]
    %v74 = vld [vmem:[%s3 + $0x50] sm:$0xf]
    %v75 = vld [vmem:[%s3 + $0x54] sm:$0xf]
    %v76 = vld [vmem:[%s3 + $0x58] sm:$0xf]
    %v77 = vld [vmem:[%s3 + $0x5c] sm:$0xf]
    %v78 = vld [vmem:[#allocation2] sm:$0xff]
    %v79 = vld [vmem:[#allocation2 + $0x8] sm:$0xff]
    %v82 = vunpack.c.l.b16 %v52
    %v83 = vunpack.c.h.b16 %v52
    %v84 = vunpack.c.l.b16 %v53
    %v85 = vunpack.c.h.b16 %v53
    %v86 = vpack.c.b16 %v84, %v82
    %v87 = vpack.c.b16 %v85, %v83
    %v113 = vunpack.c.l.b16 %v54
    %v114 = vunpack.c.l.b16 %v55
    %v115 = vunpack.c.l.b16 %v56
    %v116 = vunpack.c.l.b16 %v57
    %v117 = vunpack.c.l.b16 %v58
    %v118 = vunpack.c.l.b16 %v59
    %v119 = vunpack.c.l.b16 %v60
    %v120 = vunpack.c.l.b16 %v61
    %v121 = vunpack.c.l.b16 %v62
    %v122 = vunpack.c.l.b16 %v63
    %v123 = vunpack.c.l.b16 %v64
    %v124 = vunpack.c.l.b16 %v65
    %v125 = vunpack.c.l.b16 %v66
    %v126 = vunpack.c.l.b16 %v67
    %v127 = vunpack.c.l.b16 %v68
    %v128 = vunpack.c.l.b16 %v69
    %v129 = vunpack.c.l.b16 %v70
    %v130 = vunpack.c.l.b16 %v71
    %v131 = vunpack.c.l.b16 %v72
    %v132 = vunpack.c.l.b16 %v73
    %v133 = vunpack.c.l.b16 %v74
    %v134 = vunpack.c.l.b16 %v75
    %v135 = vunpack.c.l.b16 %v76
    %v136 = vunpack.c.l.b16 %v77
    %v137 = vpack.c.b16 %v114, %v113
    %v138 = vpack.c.b16 %v116, %v115
    %v139 = vpack.c.b16 %v118, %v117
    %v140 = vpack.c.b16 %v120, %v119
    %v141 = vpack.c.b16 %v122, %v121
    %v142 = vpack.c.b16 %v124, %v123
    %v143 = vpack.c.b16 %v126, %v125
    %v144 = vpack.c.b16 %v128, %v127
    %v145 = vpack.c.b16 %v130, %v129
    %v146 = vpack.c.b16 %v132, %v131
    %v147 = vpack.c.b16 %v134, %v133
    %v148 = vpack.c.b16 %v136, %v135
    %vm161 = vcmask 523264
    %v163 = vsel %vm161, %v87, 0
    %165 = vmatpush.bf16.msra.mxu0 %v144
    %166 = vmatpush.bf16.msra.mxu0 %v143
    %167 = vmatpush.bf16.msra.mxu0 %v142
    %168 = vmatpush.bf16.msra.mxu0 %v141
    %169 = vmatpush.bf16.msra.mxu0 %v140
    %170 = vmatpush.bf16.msra.mxu0 %v139
    %171 = vmatpush.bf16.msra.mxu0 %v138
    %172 = vmatpush.bf16.msra.mxu0 %v137
    %173 = vmatmul.bf16.gmra.mxu0 %v86
    %v174 = vpop.f32.mrf.mxu0
    %v175 = vadd.f32 %v78, %v174
    %v176 = vpop.f32.mrf.mxu0
    %v177 = vadd.f32 %v79, %v176
    %178 = vdwg.mxu0
    %179 = vmatpush.bf16.msra.mxu0 0
    %180 = vmatpush.bf16.msra.mxu0 0
    %181 = vmatpush.bf16.msra.mxu0 0
    %182 = vmatpush.bf16.msra.mxu0 0
    %183 = vmatpush.bf16.msra.mxu0 %v148
    %184 = vmatpush.bf16.msra.mxu0 %v147
    %185 = vmatpush.bf16.msra.mxu0 %v146
    %186 = vmatpush.bf16.msra.mxu0 %v145
    %187 = vmatmul.bf16.gmra.mxu0 %v163
    %v188 = vpop.f32.mrf.mxu0
    %v189 = vadd.f32 %v175, %v188
    %v190 = vpop.f32.mrf.mxu0
    %v191 = vadd.f32 %v177, %v190
    %192 = vdwg.mxu0
    %v193 = vld [vmem:[#allocation2 + $0x10] sm:$0xff]
    %v194 = vld [vmem:[#allocation2 + $0x18] sm:$0xff]
    %v195 = vld [vmem:[#allocation2 + $0xd0] sm:$0x1]
    %v196 = vld [vmem:[#allocation2 + $0xd8] sm:$0x1]
    %vm197 = vcmask 261120
    %v198 = vsel %vm197, %v189, 0.0
    %199 = vadd.xlane.f32.xlu0 %v198
    %v200 = vpop.xlane.xlu0 %199
    %v201 = vsel %vm197, %v191, 0.0
    %202 = vadd.xlane.f32.xlu0 %v201
    %v203 = vpop.xlane.xlu0 %202
    %v204 = vrcp.pop 32.0
    %v205 = vmul.f32 32.0, %v204
    %v206 = vsub.f32 1.0, %v205
    %v207 = vmul.f32 %v204, %v206
    %v208 = vadd.f32 %v204, %v207
    %vm209 = vweird.f32 %v204
    %v210 = vsel %vm209, %v204, %v208
    %v211 = vmul.f32 %v200, %v210
    %v212 = vmul.f32 %v203, %v210
    %v213 = vsub.f32 %v189, %v211
    %v214 = vsub.f32 %v191, %v212
    %v215 = vmul.f32 %v213, %v213
    %v216 = vmul.f32 %v214, %v214
    %v217 = vsel %vm197, %v215, 0.0
    %218 = vadd.xlane.f32.xlu0 %v217
    %v219 = vpop.xlane.xlu0 %218
    %v220 = vsel %vm197, %v216, 0.0
    %221 = vadd.xlane.f32.xlu0 %v220
    %v222 = vpop.xlane.xlu0 %221
    %v223 = vmul.f32 %v219, %v210
    %v224 = vmul.f32 %v222, %v210
    %v225 = vadd.f32 %v223, 1e-06
    %v226 = vadd.f32 %v224, 1e-06
    %v227 = vrsqrt.pop %v225
    %v228 = vmul.f32 %v227, %v225
    %v229 = vmul.f32 %v228, %v227
    %v230 = vmul.f32 0.5, %v229
    %v231 = vsub.f32 1.5, %v230
    %v232 = vmul.f32 %v227, %v231
    %vm233 = vweird.f32 %v225
    %vm234 = vweird.f32 %v227
    %vm235 = vmor %vm233, %vm234
    %v236 = vsel %vm235, %v227, %v232
    %v237 = vrsqrt.pop %v226
    %v238 = vmul.f32 %v237, %v226
    %v239 = vmul.f32 %v238, %v237
    %v240 = vmul.f32 0.5, %v239
    %v241 = vsub.f32 1.5, %v240
    %v242 = vmul.f32 %v237, %v241
    %vm243 = vweird.f32 %v226
    %vm244 = vweird.f32 %v237
    %vm245 = vmor %vm243, %vm244
    %v246 = vsel %vm245, %v237, %v242
    %v247 = vmul.f32 %v213, %v236
    %v248 = vmul.f32 %v214, %v246
    %v249 = vperm.slane %v195, 0
    %v250 = vmul.f32 %v247, %v249
    %v251 = vmul.f32 %v248, %v249
    %v252 = vperm.slane %v196, 0
    %v253 = vadd.f32 %v250, %v252
    %v254 = vadd.f32 %v251, %v252
    %v255 = vpack.c.bf16 %v254, %v253
    %v256 = vld [vmem:[%s3 + $0x60] sm:$0xf]
    %v257 = vld [vmem:[%s3 + $0x64] sm:$0xf]
    %v258 = vld [vmem:[%s3 + $0x68] sm:$0xf]
    %v259 = vld [vmem:[%s3 + $0x6c] sm:$0xf]
    %v260 = vld [vmem:[#allocation2 + $0xb8] sm:$0x1]
    %v261 = vld [vmem:[%s3 + $0x70] sm:$0xf]
    %v262 = vld [vmem:[%s3 + $0x74] sm:$0xf]
    %v263 = vld [vmem:[%s3 + $0x78] sm:$0xf]
    %v264 = vld [vmem:[%s3 + $0x7c] sm:$0xf]
    %v265 = vld [vmem:[#allocation2 + $0xc0] sm:$0x1]
    %v266 = vld [vmem:[%s3 + $0x80] sm:$0xf]
    %v267 = vld [vmem:[%s3 + $0x84] sm:$0xf]
    %v268 = vld [vmem:[%s3 + $0x88] sm:$0xf]
    %v269 = vld [vmem:[%s3 + $0x8c] sm:$0xf]
    %v270 = vld [vmem:[#allocation2 + $0xc8] sm:$0x1]
    %v271 = vperm.slane %v260, 0
    %v276 = vunpack.c.l.b16 %v256
    %v277 = vunpack.c.l.b16 %v257
    %v278 = vunpack.c.l.b16 %v258
    %v279 = vunpack.c.l.b16 %v259
    %v280 = vpack.c.b16 %v277, %v276
    %v281 = vpack.c.b16 %v279, %v278
    %v285 = vsel %vm197, %v255, 0
    %287 = vmatpush.bf16.msra.mxu0 0
    %288 = vmatpush.bf16.msra.mxu0 0
    %289 = vmatpush.bf16.msra.mxu0 0
    %290 = vmatpush.bf16.msra.mxu0 0
    %291 = vmatpush.bf16.msra.mxu0 0
    %292 = vmatpush.bf16.msra.mxu0 0
    %293 = vmatpush.bf16.msra.mxu0 %v281
    %294 = vmatpush.bf16.msra.mxu0 %v280
    %295 = vmatmul.bf16.gmra.mxu0 %v285
    %v296 = vpop.f32.mrf.mxu0
    %v297 = vadd.f32 %v271, %v296
    %v298 = vpop.f32.mrf.mxu0
    %v299 = vadd.f32 %v271, %v298
    %300 = vdwg.mxu0
    %v301 = vperm.slane %v265, 0
    %v306 = vunpack.c.l.b16 %v261
    %v307 = vunpack.c.l.b16 %v262
    %v308 = vunpack.c.l.b16 %v263
    %v309 = vunpack.c.l.b16 %v264
    %v310 = vpack.c.b16 %v307, %v306
    %v311 = vpack.c.b16 %v309, %v308
    %314 = vmatpush.bf16.msra.mxu0 0
    %315 = vmatpush.bf16.msra.mxu0 0
    %316 = vmatpush.bf16.msra.mxu0 0
    %317 = vmatpush.bf16.msra.mxu0 0
    %318 = vmatpush.bf16.msra.mxu0 0
    %319 = vmatpush.bf16.msra.mxu0 0
    %320 = vmatpush.bf16.msra.mxu0 %v311
    %321 = vmatpush.bf16.msra.mxu0 %v310
    %322 = vmatmul.bf16.gmra.mxu0 %v285
    %v323 = vpop.f32.mrf.mxu0
    %v324 = vadd.f32 %v301, %v323
    %v325 = vpop.f32.mrf.mxu0
    %v326 = vadd.f32 %v301, %v325
    %327 = vdwg.mxu0
    %v328 = vmul.f32 %v324, %v40
    %v329 = vmul.f32 %v326, %v41
    %v330 = vmul.f32 %v324, %v42
    %v331 = vmul.f32 %v326, %v43
    %v332 = vmul.f32 %v324, %v44
    %v333 = vmul.f32 %v326, %v45
    %v334 = vmul.f32 %v324, %v46
    %v335 = vmul.f32 %v326, %v47
    %v336 = vpack.c.bf16 %v329, %v328
    %v337 = vpack.c.bf16 %v331, %v330
    %v338 = vpack.c.bf16 %v333, %v332
    %v339 = vpack.c.bf16 %v335, %v334
    %348 = vrot.lane.b32.xlu0 %v40, 32
    %v349 = vpop.permute.xlu0 %348
    %350 = vrot.lane.b32.xlu0 %v41, 32
    %v351 = vpop.permute.xlu0 %350
    %352 = vrot.lane.b32.xlu0 %v42, 32
    %v353 = vpop.permute.xlu0 %352
    %354 = vrot.lane.b32.xlu0 %v43, 32
    %v355 = vpop.permute.xlu0 %354
    %356 = vrot.lane.b32.xlu0 %v44, 32
    %v357 = vpop.permute.xlu0 %356
    %358 = vrot.lane.b32.xlu0 %v45, 32
    %v359 = vpop.permute.xlu0 %358
    %360 = vrot.lane.b32.xlu0 %v46, 32
    %v361 = vpop.permute.xlu0 %360
    %362 = vrot.lane.b32.xlu0 %v47, 32
    %v363 = vpop.permute.xlu0 %362
    %v372 = vmul.f32 %v324, %v349
    %v373 = vmul.f32 %v326, %v351
    %v374 = vmul.f32 %v324, %v353
    %v375 = vmul.f32 %v326, %v355
    %v376 = vmul.f32 %v324, %v357
    %v377 = vmul.f32 %v326, %v359
    %v378 = vmul.f32 %v324, %v361
    %v379 = vmul.f32 %v326, %v363
    %v380 = vpack.c.bf16 %v373, %v372
    %v381 = vpack.c.bf16 %v375, %v374
    %v382 = vpack.c.bf16 %v377, %v376
    %v383 = vpack.c.bf16 %v379, %v378
    %v384 = vpack.c.bf16 %v299, %v297
    %v386 = vsel %vm197, %v384, 0
    %v389 = vsel %vm197, %v336, 0
    %v392 = vsel %vm197, %v337, 0
    %v395 = vsel %vm197, %v338, 0
    %v398 = vsel %vm197, %v339, 0
    %400 = vmatpush.bf16.xpose.msra.mxu0 0
    %401 = vmatpush.bf16.xpose.msra.mxu0 0
    %402 = vmatpush.bf16.xpose.msra.mxu0 0
    %403 = vmatpush.bf16.xpose.msra.mxu0 0
    %404 = vmatpush.bf16.xpose.msra.mxu0 %v398
    %405 = vmatpush.bf16.xpose.msra.mxu0 %v395
    %406 = vmatpush.bf16.xpose.msra.mxu0 %v392
    %407 = vmatpush.bf16.xpose.msra.mxu0 %v389
    %408 = vmatmul.bf16.gmra.mxu0 %v386
    %v409 = vpop.f32.mrf.mxu0
    %v410 = vadd.f32 0.0, %v409
    %v411 = vpop.f32.mrf.mxu0
    %v412 = vadd.f32 0.0, %v411
    %413 = vdwg.mxu0
    %v414 = vmul.f32 %v410, 0.35355338
    %v415 = vmul.f32 %v412, 0.35355338
    %v416 = vadd.f32 %v414, %v193
    %v417 = vadd.f32 %v415, %v194
    %v418 = vsel %vm161, %v416, -inf
    %419 = vmax.xlane.f32.xlu0 %v418
    %v420 = vpop.xlane.xlu0 %419
    %v421 = vsel %vm161, %v417, -inf
    %422 = vmax.xlane.f32.xlu0 %v421
    %v423 = vpop.xlane.xlu0 %422
    %v424 = vsub.f32 %v416, %v420
    %v425 = vsub.f32 %v417, %v423
    %v426 = vmul.f32 %v424, 1.442695
    %v427 = vpow.pop %v426
    %v428 = vmul.f32 %v425, 1.442695
    %v429 = vpow.pop %v428
    %v430 = vpack.c.bf16 %v429, %v427
    %435 = vrot.lane.b32.xlu0 %v380, 96
    %v436 = vpop.permute.xlu0 %435
    %437 = vrot.lane.b32.xlu0 %v381, 96
    %v438 = vpop.permute.xlu0 %437
    %439 = vrot.lane.b32.xlu0 %v382, 96
    %v440 = vpop.permute.xlu0 %439
    %441 = vrot.lane.b32.xlu0 %v383, 96
    %v442 = vpop.permute.xlu0 %441
    %v448 = vsel %vm161, %v430, 0
    %450 = vmatpush.bf16.msra.mxu0 0
    %451 = vmatpush.bf16.msra.mxu0 0
    %452 = vmatpush.bf16.msra.mxu0 0
    %453 = vmatpush.bf16.msra.mxu0 0
    %454 = vmatpush.bf16.msra.mxu0 %v442
    %455 = vmatpush.bf16.msra.mxu0 %v440
    %456 = vmatpush.bf16.msra.mxu0 %v438
    %457 = vmatpush.bf16.msra.mxu0 %v436
    %458 = vmatmul.bf16.gmra.mxu0 %v448
    %v459 = vpop.f32.mrf.mxu0
    %v460 = vadd.f32 0.0, %v459
    %v461 = vpop.f32.mrf.mxu0
    %v462 = vadd.f32 0.0, %v461
    %463 = vdwg.mxu0
    %464 = vmatpush.bf16.msra.mxu0 0
    %465 = vmatpush.bf16.msra.mxu0 0
    %466 = vmatpush.bf16.msra.mxu0 0
    %467 = vmatpush.bf16.msra.mxu0 0
    %468 = vmatpush.bf16.msra.mxu0 %v51
    %469 = vmatpush.bf16.msra.mxu0 %v50
    %470 = vmatpush.bf16.msra.mxu0 %v49
    %471 = vmatpush.bf16.msra.mxu0 %v48
    %472 = vmatmul.bf16.gmra.mxu0 %v448
    %v473 = vpop.f32.mrf.mxu0
    %v474 = vadd.f32 1e-30, %v473
    %v475 = vpop.f32.mrf.mxu0
    %v476 = vadd.f32 1e-30, %v475
    %477 = vdwg.mxu0
    %v478 = vrcp.pop %v474
    %v479 = vrcp.pop %v476
    %v480 = vmul.f32 %v460, %v478
    %v481 = vmul.f32 %v462, %v479
    %v482 = vpack.c.bf16 %v481, %v480
    %v483 = vperm.slane %v270, 0
    %v488 = vunpack.c.l.b16 %v266
    %v489 = vunpack.c.l.b16 %v267
    %v490 = vunpack.c.l.b16 %v268
    %v491 = vunpack.c.l.b16 %v269
    %v492 = vpack.c.b16 %v489, %v488
    %v493 = vpack.c.b16 %v491, %v490
    %v497 = vsel %vm197, %v482, 0
    %499 = vmatpush.bf16.msra.mxu0 0
    %500 = vmatpush.bf16.msra.mxu0 0
    %501 = vmatpush.bf16.msra.mxu0 0
    %502 = vmatpush.bf16.msra.mxu0 0
    %503 = vmatpush.bf16.msra.mxu0 0
    %504 = vmatpush.bf16.msra.mxu0 0
    %505 = vmatpush.bf16.msra.mxu0 %v493
    %506 = vmatpush.bf16.msra.mxu0 %v492
    %507 = vmatmul.bf16.gmra.mxu0 %v497
    %v508 = vpop.f32.mrf.mxu0
    %v509 = vadd.f32 %v483, %v508
    %v510 = vpop.f32.mrf.mxu0
    %v511 = vadd.f32 %v483, %v510
    %512 = vdwg.mxu0
    %v513 = vadd.f32 %v189, %v509
    %v514 = vadd.f32 %v191, %v511
    %v515 = vld [vmem:[#allocation2 + $0xe0] sm:$0x1]
    %v516 = vld [vmem:[#allocation2 + $0xe8] sm:$0x1]
    %v517 = vsel %vm197, %v513, 0.0
    %518 = vadd.xlane.f32.xlu0 %v517
    %v519 = vpop.xlane.xlu0 %518
    %v520 = vsel %vm197, %v514, 0.0
    %521 = vadd.xlane.f32.xlu0 %v520
    %v522 = vpop.xlane.xlu0 %521
    %v523 = vmul.f32 %v519, %v210
    %v524 = vmul.f32 %v522, %v210
    %v525 = vsub.f32 %v513, %v523
    %v526 = vsub.f32 %v514, %v524
    %v527 = vmul.f32 %v525, %v525
    %v528 = vmul.f32 %v526, %v526
    %v529 = vsel %vm197, %v527, 0.0
    %530 = vadd.xlane.f32.xlu0 %v529
    %v531 = vpop.xlane.xlu0 %530
    %v532 = vsel %vm197, %v528, 0.0
    %533 = vadd.xlane.f32.xlu0 %v532
    %v534 = vpop.xlane.xlu0 %533
    %v535 = vmul.f32 %v531, %v210
    %v536 = vmul.f32 %v534, %v210
    %v537 = vadd.f32 %v535, 1e-06
    %v538 = vadd.f32 %v536, 1e-06
    %v539 = vrsqrt.pop %v537
    %v540 = vmul.f32 %v539, %v537
    %v541 = vmul.f32 %v540, %v539
    %v542 = vmul.f32 0.5, %v541
    %v543 = vsub.f32 1.5, %v542
    %v544 = vmul.f32 %v539, %v543
    %vm545 = vweird.f32 %v537
    %vm546 = vweird.f32 %v539
    %vm547 = vmor %vm545, %vm546
    %v548 = vsel %vm547, %v539, %v544
    %v549 = vrsqrt.pop %v538
    %v550 = vmul.f32 %v549, %v538
    %v551 = vmul.f32 %v550, %v549
    %v552 = vmul.f32 0.5, %v551
    %v553 = vsub.f32 1.5, %v552
    %v554 = vmul.f32 %v549, %v553
    %vm555 = vweird.f32 %v538
    %vm556 = vweird.f32 %v549
    %vm557 = vmor %vm555, %vm556
    %v558 = vsel %vm557, %v549, %v554
    %v559 = vmul.f32 %v525, %v548
    %v560 = vmul.f32 %v526, %v558
    %v561 = vperm.slane %v515, 0
    %v562 = vmul.f32 %v559, %v561
    %v563 = vmul.f32 %v560, %v561
    %v564 = vperm.slane %v516, 0
    %v565 = vadd.f32 %v562, %v564
    %v566 = vadd.f32 %v563, %v564
    %v567 = vpack.c.bf16 %v566, %v565
    %v568 = vld [vmem:[%s3 + $0x90] sm:$0xf]
    %v569 = vld [vmem:[%s3 + $0x94] sm:$0xf]
    %v570 = vld [vmem:[%s3 + $0x98] sm:$0xf]
    %v571 = vld [vmem:[%s3 + $0x9c] sm:$0xf]
    %v572 = vld [vmem:[#allocation2 + $0xf0] sm:$0x1]
    %v573 = vld [vmem:[%s3 + $0xa0] sm:$0xf]
    %v574 = vld [vmem:[%s3 + $0xa4] sm:$0xf]
    %v575 = vld [vmem:[%s3 + $0xa8] sm:$0xf]
    %v576 = vld [vmem:[%s3 + $0xac] sm:$0xf]
    %v577 = vld [vmem:[%s3 + $0xb0] sm:$0xf]
    %v578 = vld [vmem:[%s3 + $0xb4] sm:$0xf]
    %v579 = vld [vmem:[%s3 + $0xb8] sm:$0xf]
    %v580 = vld [vmem:[%s3 + $0xbc] sm:$0xf]
    %v581 = vld [vmem:[%s3 + $0xc0] sm:$0xf]
    %v582 = vld [vmem:[%s3 + $0xc4] sm:$0xf]
    %v583 = vld [vmem:[%s3 + $0xc8] sm:$0xf]
    %v584 = vld [vmem:[%s3 + $0xcc] sm:$0xf]
    %v585 = vld [vmem:[%s3 + $0xd0] sm:$0xf]
    %v586 = vld [vmem:[%s3 + $0xd4] sm:$0xf]
    %v587 = vld [vmem:[%s3 + $0xd8] sm:$0xf]
    %v588 = vld [vmem:[%s3 + $0xdc] sm:$0xf]
    %v589 = vld [vmem:[#allocation2 + $0xf8] sm:$0x1]
    %v590 = vperm.slane %v572, 0
    %v595 = vunpack.c.l.b16 %v568
    %v596 = vunpack.c.l.b16 %v569
    %v597 = vunpack.c.l.b16 %v570
    %v598 = vunpack.c.l.b16 %v571
    %v599 = vpack.c.b16 %v596, %v595
    %v600 = vpack.c.b16 %v598, %v597
    %v604 = vsel %vm197, %v567, 0
    %606 = vmatpush.bf16.msra.mxu0 0
    %607 = vmatpush.bf16.msra.mxu0 0
    %608 = vmatpush.bf16.msra.mxu0 0
    %609 = vmatpush.bf16.msra.mxu0 0
    %610 = vmatpush.bf16.msra.mxu0 0
    %611 = vmatpush.bf16.msra.mxu0 0
    %612 = vmatpush.bf16.msra.mxu0 %v600
    %613 = vmatpush.bf16.msra.mxu0 %v599
    %614 = vmatmul.bf16.gmra.mxu0 %v604
    %v615 = vpop.f32.mrf.mxu0
    %v616 = vadd.f32 %v590, %v615
    %v617 = vpop.f32.mrf.mxu0
    %v618 = vadd.f32 %v590, %v617
    %619 = vdwg.mxu0
    %v620 = vmul.f32 %v616, %v616
    %v621 = vmul.f32 %v618, %v618
    %v622 = vmul.f32 %v616, %v620
    %v623 = vmul.f32 %v618, %v621
    %v624 = vmul.f32 %v622, 0.044715
    %v625 = vmul.f32 %v623, 0.044715
    %v626 = vadd.f32 %v616, %v624
    %v627 = vadd.f32 %v618, %v625
    %v628 = vmul.f32 %v626, 0.7978846
    %v629 = vmul.f32 %v627, 0.7978846
    %v630 = vtanh.pop %v628
    %v631 = vtanh.pop %v629
    %v632 = vadd.f32 %v630, 1.0
    %v633 = vadd.f32 %v631, 1.0
    %v634 = vmul.f32 %v632, 0.5
    %v635 = vmul.f32 %v633, 0.5
    %v636 = vmul.f32 %v616, %v634
    %v637 = vmul.f32 %v618, %v635
    %v638 = vpack.c.bf16 %v637, %v636
    %v639 = vperm.slane %v589, 0
    %v656 = vunpack.c.l.b16 %v573
    %v657 = vunpack.c.l.b16 %v574
    %v658 = vunpack.c.l.b16 %v575
    %v659 = vunpack.c.l.b16 %v576
    %v660 = vunpack.c.l.b16 %v577
    %v661 = vunpack.c.l.b16 %v578
    %v662 = vunpack.c.l.b16 %v579
    %v663 = vunpack.c.l.b16 %v580
    %v664 = vunpack.c.l.b16 %v581
    %v665 = vunpack.c.l.b16 %v582
    %v666 = vunpack.c.l.b16 %v583
    %v667 = vunpack.c.l.b16 %v584
    %v668 = vunpack.c.l.b16 %v585
    %v669 = vunpack.c.l.b16 %v586
    %v670 = vunpack.c.l.b16 %v587
    %v671 = vunpack.c.l.b16 %v588
    %v672 = vpack.c.b16 %v657, %v656
    %v673 = vpack.c.b16 %v659, %v658
    %v674 = vpack.c.b16 %v661, %v660
    %v675 = vpack.c.b16 %v663, %v662
    %v676 = vpack.c.b16 %v665, %v664
    %v677 = vpack.c.b16 %v667, %v666
    %v678 = vpack.c.b16 %v669, %v668
    %v679 = vpack.c.b16 %v671, %v670
    %688 = vmatpush.bf16.msra.mxu0 %v679
    %689 = vmatpush.bf16.msra.mxu0 %v678
    %690 = vmatpush.bf16.msra.mxu0 %v677
    %691 = vmatpush.bf16.msra.mxu0 %v676
    %692 = vmatpush.bf16.msra.mxu0 %v675
    %693 = vmatpush.bf16.msra.mxu0 %v674
    %694 = vmatpush.bf16.msra.mxu0 %v673
    %695 = vmatpush.bf16.msra.mxu0 %v672
    %696 = vmatmul.bf16.gmra.mxu0 %v638
    %v697 = vpop.f32.mrf.mxu0
    %v698 = vadd.f32 %v639, %v697
    %v699 = vpop.f32.mrf.mxu0
    %v700 = vadd.f32 %v639, %v699
    %701 = vdwg.mxu0
    %v702 = vadd.f32 %v513, %v698
    %v703 = vadd.f32 %v514, %v700
    %v704 = vld [vmem:[#allocation2 + $0x80] sm:$0x1]
    %v705 = vld [vmem:[#allocation2 + $0x88] sm:$0x1]
    %v706 = vsel %vm197, %v702, 0.0
    %707 = vadd.xlane.f32.xlu0 %v706
    %v708 = vpop.xlane.xlu0 %707
    %v709 = vsel %vm197, %v703, 0.0
    %710 = vadd.xlane.f32.xlu0 %v709
    %v711 = vpop.xlane.xlu0 %710
    %v712 = vmul.f32 %v708, %v210
    %v713 = vmul.f32 %v711, %v210
    %v714 = vsub.f32 %v702, %v712
    %v715 = vsub.f32 %v703, %v713
    %v716 = vmul.f32 %v714, %v714
    %v717 = vmul.f32 %v715, %v715
    %v718 = vsel %vm197, %v716, 0.0
    %719 = vadd.xlane.f32.xlu0 %v718
    %v720 = vpop.xlane.xlu0 %719
    %v721 = vsel %vm197, %v717, 0.0
    %722 = vadd.xlane.f32.xlu0 %v721
    %v723 = vpop.xlane.xlu0 %722
    %v724 = vmul.f32 %v720, %v210
    %v725 = vmul.f32 %v723, %v210
    %v726 = vadd.f32 %v724, 1e-06
    %v727 = vadd.f32 %v725, 1e-06
    %v728 = vrsqrt.pop %v726
    %v729 = vmul.f32 %v728, %v726
    %v730 = vmul.f32 %v729, %v728
    %v731 = vmul.f32 0.5, %v730
    %v732 = vsub.f32 1.5, %v731
    %v733 = vmul.f32 %v728, %v732
    %vm734 = vweird.f32 %v726
    %vm735 = vweird.f32 %v728
    %vm736 = vmor %vm734, %vm735
    %v737 = vsel %vm736, %v728, %v733
    %v738 = vrsqrt.pop %v727
    %v739 = vmul.f32 %v738, %v727
    %v740 = vmul.f32 %v739, %v738
    %v741 = vmul.f32 0.5, %v740
    %v742 = vsub.f32 1.5, %v741
    %v743 = vmul.f32 %v738, %v742
    %vm744 = vweird.f32 %v727
    %vm745 = vweird.f32 %v738
    %vm746 = vmor %vm744, %vm745
    %v747 = vsel %vm746, %v738, %v743
    %v748 = vmul.f32 %v714, %v737
    %v749 = vmul.f32 %v715, %v747
    %v750 = vperm.slane %v704, 0
    %v751 = vmul.f32 %v748, %v750
    %v752 = vmul.f32 %v749, %v750
    %v753 = vperm.slane %v705, 0
    %v754 = vadd.f32 %v751, %v753
    %v755 = vadd.f32 %v752, %v753
    %v756 = vpack.c.bf16 %v755, %v754
    %v757 = vld [vmem:[%s3 + $0xe0] sm:$0xf]
    %v758 = vld [vmem:[%s3 + $0xe4] sm:$0xf]
    %v759 = vld [vmem:[%s3 + $0xe8] sm:$0xf]
    %v760 = vld [vmem:[%s3 + $0xec] sm:$0xf]
    %v761 = vld [vmem:[%s3 + $0xf0] sm:$0xf]
    %v762 = vld [vmem:[%s3 + $0xf4] sm:$0xf]
    %v763 = vld [vmem:[%s3 + $0xf8] sm:$0xf]
    %v764 = vld [vmem:[%s3 + $0xfc] sm:$0xf]
    %v765 = vld [vmem:[%s3 + $0x100] sm:$0xf]
    %v766 = vld [vmem:[%s3 + $0x104] sm:$0xf]
    %v767 = vld [vmem:[%s3 + $0x108] sm:$0xf]
    %v768 = vld [vmem:[%s3 + $0x10c] sm:$0xf]
    %v769 = vld [vmem:[%s3 + $0x110] sm:$0xf]
    %v770 = vld [vmem:[%s3 + $0x114] sm:$0xf]
    %v771 = vld [vmem:[%s3 + $0x118] sm:$0xf]
    %v772 = vld [vmem:[%s3 + $0x11c] sm:$0xf]
    %v773 = vld [vmem:[%s1] sm:$0xf]
    %v774 = vld [vmem:[%s1 + $0x4] sm:$0xf]
    %v775 = vld [vmem:[#allocation2 + $0x90] sm:$0xff]
    %v776 = vld [vmem:[#allocation2 + $0x98] sm:$0xff]
    %v779 = vunpack.c.l.b16 %v773
    %v780 = vunpack.c.l.b16 %v774
    %v781 = vpack.c.b16 %v780, %v779
    %v799 = vunpack.c.l.b16 %v757
    %v800 = vunpack.c.l.b16 %v758
    %v801 = vunpack.c.l.b16 %v759
    %v802 = vunpack.c.l.b16 %v760
    %v803 = vunpack.c.l.b16 %v761
    %v804 = vunpack.c.l.b16 %v762
    %v805 = vunpack.c.l.b16 %v763
    %v806 = vunpack.c.l.b16 %v764
    %v807 = vunpack.c.l.b16 %v765
    %v808 = vunpack.c.l.b16 %v766
    %v809 = vunpack.c.l.b16 %v767
    %v810 = vunpack.c.l.b16 %v768
    %v811 = vunpack.c.l.b16 %v769
    %v812 = vunpack.c.l.b16 %v770
    %v813 = vunpack.c.l.b16 %v771
    %v814 = vunpack.c.l.b16 %v772
    %v815 = vpack.c.b16 %v800, %v799
    %v816 = vpack.c.b16 %v802, %v801
    %v817 = vpack.c.b16 %v804, %v803
    %v818 = vpack.c.b16 %v806, %v805
    %v819 = vpack.c.b16 %v808, %v807
    %v820 = vpack.c.b16 %v810, %v809
    %v821 = vpack.c.b16 %v812, %v811
    %v822 = vpack.c.b16 %v814, %v813
    %831 = vmatpush.bf16.msra.mxu0 %v822
    %832 = vmatpush.bf16.msra.mxu0 %v821
    %833 = vmatpush.bf16.msra.mxu0 %v820
    %834 = vmatpush.bf16.msra.mxu0 %v819
    %835 = vmatpush.bf16.msra.mxu0 %v818
    %836 = vmatpush.bf16.msra.mxu0 %v817
    %837 = vmatpush.bf16.msra.mxu0 %v816
    %838 = vmatpush.bf16.msra.mxu0 %v815
    %839 = vmatmul.bf16.gmra.mxu0 %v781
    %v840 = vpop.f32.mrf.mxu0
    %v841 = vadd.f32 %v775, %v840
    %v842 = vpop.f32.mrf.mxu0
    %v843 = vadd.f32 %v776, %v842
    %844 = vdwg.mxu0
    %v845 = vld [vmem:[#allocation2 + $0xa0] sm:$0x1]
    %v846 = vld [vmem:[#allocation2 + $0xa8] sm:$0x1]
    %v847 = vsel %vm197, %v841, 0.0
    %848 = vadd.xlane.f32.xlu0 %v847
    %v849 = vpop.xlane.xlu0 %848
    %v850 = vsel %vm197, %v843, 0.0
    %851 = vadd.xlane.f32.xlu0 %v850
    %v852 = vpop.xlane.xlu0 %851
    %v853 = vmul.f32 %v849, %v210
    %v854 = vmul.f32 %v852, %v210
    %v855 = vsub.f32 %v841, %v853
    %v856 = vsub.f32 %v843, %v854
    %v857 = vmul.f32 %v855, %v855
    %v858 = vmul.f32 %v856, %v856
    %v859 = vsel %vm197, %v857, 0.0
    %860 = vadd.xlane.f32.xlu0 %v859
    %v861 = vpop.xlane.xlu0 %860
    %v862 = vsel %vm197, %v858, 0.0
    %863 = vadd.xlane.f32.xlu0 %v862
    %v864 = vpop.xlane.xlu0 %863
    %v865 = vmul.f32 %v861, %v210
    %v866 = vmul.f32 %v864, %v210
    %v867 = vadd.f32 %v865, 1e-12
    %v868 = vadd.f32 %v866, 1e-12
    %v869 = vrsqrt.pop %v867
    %v870 = vmul.f32 %v869, %v867
    %v871 = vmul.f32 %v870, %v869
    %v872 = vmul.f32 0.5, %v871
    %v873 = vsub.f32 1.5, %v872
    %v874 = vmul.f32 %v869, %v873
    %vm875 = vweird.f32 %v867
    %vm876 = vweird.f32 %v869
    %vm877 = vmor %vm875, %vm876
    %v878 = vsel %vm877, %v869, %v874
    %v879 = vrsqrt.pop %v868
    %v880 = vmul.f32 %v879, %v868
    %v881 = vmul.f32 %v880, %v879
    %v882 = vmul.f32 0.5, %v881
    %v883 = vsub.f32 1.5, %v882
    %v884 = vmul.f32 %v879, %v883
    %vm885 = vweird.f32 %v868
    %vm886 = vweird.f32 %v879
    %vm887 = vmor %vm885, %vm886
    %v888 = vsel %vm887, %v879, %v884
    %v889 = vmul.f32 %v855, %v878
    %v890 = vmul.f32 %v856, %v888
    %v891 = vperm.slane %v845, 0
    %v892 = vmul.f32 %v889, %v891
    %v893 = vmul.f32 %v890, %v891
    %v894 = vperm.slane %v846, 0
    %v895 = vadd.f32 %v892, %v894
    %v896 = vadd.f32 %v893, %v894
    %v897 = vld [vmem:[#allocation2 + $0x20] sm:$0xff]
    %v898 = vld [vmem:[#allocation2 + $0x28] sm:$0xff]
    %v899 = vld [vmem:[#allocation2 + $0x30] sm:$0xff]
    %v900 = vld [vmem:[#allocation2 + $0x38] sm:$0xff]
    %v901 = vpack.c.bf16 %v896, %v895
    %v902 = vld [vmem:[%s3 + $0x120] sm:$0xf]
    %v903 = vld [vmem:[%s3 + $0x124] sm:$0xf]
    %v904 = vld [vmem:[%s3 + $0x128] sm:$0xf]
    %v905 = vld [vmem:[%s3 + $0x12c] sm:$0xf]
    %v906 = vld [vmem:[#allocation2 + $0x100] sm:$0x1]
    %v907 = vld [vmem:[%s3 + $0x130] sm:$0xf]
    %v908 = vld [vmem:[%s3 + $0x134] sm:$0xf]
    %v909 = vld [vmem:[%s3 + $0x138] sm:$0xf]
    %v910 = vld [vmem:[%s3 + $0x13c] sm:$0xf]
    %v911 = vld [vmem:[#allocation2 + $0x108] sm:$0x1]
    %v912 = vld [vmem:[%s3 + $0x140] sm:$0xf]
    %v913 = vld [vmem:[%s3 + $0x144] sm:$0xf]
    %v914 = vld [vmem:[%s3 + $0x148] sm:$0xf]
    %v915 = vld [vmem:[%s3 + $0x14c] sm:$0xf]
    %v916 = vld [vmem:[#allocation2 + $0x110] sm:$0x1]
    %v917 = vperm.slane %v906, 0
    %v922 = vunpack.c.l.b16 %v902
    %v923 = vunpack.c.l.b16 %v903
    %v924 = vunpack.c.l.b16 %v904
    %v925 = vunpack.c.l.b16 %v905
    %v926 = vpack.c.b16 %v923, %v922
    %v927 = vpack.c.b16 %v925, %v924
    %v931 = vsel %vm197, %v901, 0
    %933 = vmatpush.bf16.msra.mxu0 0
    %934 = vmatpush.bf16.msra.mxu0 0
    %935 = vmatpush.bf16.msra.mxu0 0
    %936 = vmatpush.bf16.msra.mxu0 0
    %937 = vmatpush.bf16.msra.mxu0 0
    %938 = vmatpush.bf16.msra.mxu0 0
    %939 = vmatpush.bf16.msra.mxu0 %v927
    %940 = vmatpush.bf16.msra.mxu0 %v926
    %941 = vmatmul.bf16.gmra.mxu0 %v931
    %v942 = vpop.f32.mrf.mxu0
    %v943 = vadd.f32 %v917, %v942
    %v944 = vpop.f32.mrf.mxu0
    %v945 = vadd.f32 %v917, %v944
    %946 = vdwg.mxu0
    %v947 = vperm.slane %v911, 0
    %v952 = vunpack.c.l.b16 %v907
    %v953 = vunpack.c.l.b16 %v908
    %v954 = vunpack.c.l.b16 %v909
    %v955 = vunpack.c.l.b16 %v910
    %v956 = vpack.c.b16 %v953, %v952
    %v957 = vpack.c.b16 %v955, %v954
    %960 = vmatpush.bf16.msra.mxu0 0
    %961 = vmatpush.bf16.msra.mxu0 0
    %962 = vmatpush.bf16.msra.mxu0 0
    %963 = vmatpush.bf16.msra.mxu0 0
    %964 = vmatpush.bf16.msra.mxu0 0
    %965 = vmatpush.bf16.msra.mxu0 0
    %966 = vmatpush.bf16.msra.mxu0 %v957
    %967 = vmatpush.bf16.msra.mxu0 %v956
    %968 = vmatmul.bf16.gmra.mxu0 %v931
    %v969 = vpop.f32.mrf.mxu0
    %v970 = vadd.f32 %v947, %v969
    %v971 = vpop.f32.mrf.mxu0
    %v972 = vadd.f32 %v947, %v971
    %973 = vdwg.mxu0
    %v974 = vmul.f32 %v970, %v40
    %v975 = vmul.f32 %v972, %v41
    %v976 = vmul.f32 %v970, %v42
    %v977 = vmul.f32 %v972, %v43
    %v978 = vmul.f32 %v970, %v44
    %v979 = vmul.f32 %v972, %v45
    %v980 = vmul.f32 %v970, %v46
    %v981 = vmul.f32 %v972, %v47
    %v982 = vpack.c.bf16 %v975, %v974
    %v983 = vpack.c.bf16 %v977, %v976
    %v984 = vpack.c.bf16 %v979, %v978
    %v985 = vpack.c.bf16 %v981, %v980
    %v986 = vmul.f32 %v970, %v349
    %v987 = vmul.f32 %v972, %v351
    %v988 = vmul.f32 %v970, %v353
    %v989 = vmul.f32 %v972, %v355
    %v990 = vmul.f32 %v970, %v357
    %v991 = vmul.f32 %v972, %v359
    %v992 = vmul.f32 %v970, %v361
    %v993 = vmul.f32 %v972, %v363
    %v994 = vpack.c.bf16 %v987, %v986
    %v995 = vpack.c.bf16 %v989, %v988
    %v996 = vpack.c.bf16 %v991, %v990
    %v997 = vpack.c.bf16 %v993, %v992
    %v998 = vpack.c.bf16 %v945, %v943
    %v1000 = vsel %vm197, %v998, 0
    %v1003 = vsel %vm197, %v982, 0
    %v1006 = vsel %vm197, %v983, 0
    %v1009 = vsel %vm197, %v984, 0
    %v1012 = vsel %vm197, %v985, 0
    %1014 = vmatpush.bf16.xpose.msra.mxu0 0
    %1015 = vmatpush.bf16.xpose.msra.mxu0 0
    %1016 = vmatpush.bf16.xpose.msra.mxu0 0
    %1017 = vmatpush.bf16.xpose.msra.mxu0 0
    %1018 = vmatpush.bf16.xpose.msra.mxu0 %v1012
    %1019 = vmatpush.bf16.xpose.msra.mxu0 %v1009
    %1020 = vmatpush.bf16.xpose.msra.mxu0 %v1006
    %1021 = vmatpush.bf16.xpose.msra.mxu0 %v1003
    %1022 = vmatmul.bf16.gmra.mxu0 %v1000
    %v1023 = vpop.f32.mrf.mxu0
    %v1024 = vadd.f32 0.0, %v1023
    %v1025 = vpop.f32.mrf.mxu0
    %v1026 = vadd.f32 0.0, %v1025
    %1027 = vdwg.mxu0
    %v1028 = vmul.f32 %v1024, 0.35355338
    %v1029 = vmul.f32 %v1026, 0.35355338
    %v1030 = vadd.f32 %v1028, %v897
    %v1031 = vadd.f32 %v1029, %v898
    %v1032 = vsel %vm161, %v1030, -inf
    %1033 = vmax.xlane.f32.xlu0 %v1032
    %v1034 = vpop.xlane.xlu0 %1033
    %v1035 = vsel %vm161, %v1031, -inf
    %1036 = vmax.xlane.f32.xlu0 %v1035
    %v1037 = vpop.xlane.xlu0 %1036
    %v1038 = vsub.f32 %v1030, %v1034
    %v1039 = vsub.f32 %v1031, %v1037
    %v1040 = vmul.f32 %v1038, 1.442695
    %v1041 = vpow.pop %v1040
    %v1042 = vmul.f32 %v1039, 1.442695
    %v1043 = vpow.pop %v1042
    %v1044 = vpack.c.bf16 %v1043, %v1041
    %1049 = vrot.lane.b32.xlu0 %v994, 96
    %v1050 = vpop.permute.xlu0 %1049
    %1051 = vrot.lane.b32.xlu0 %v995, 96
    %v1052 = vpop.permute.xlu0 %1051
    %1053 = vrot.lane.b32.xlu0 %v996, 96
    %v1054 = vpop.permute.xlu0 %1053
    %1055 = vrot.lane.b32.xlu0 %v997, 96
    %v1056 = vpop.permute.xlu0 %1055
    %v1062 = vsel %vm161, %v1044, 0
    %1064 = vmatpush.bf16.msra.mxu0 0
    %1065 = vmatpush.bf16.msra.mxu0 0
    %1066 = vmatpush.bf16.msra.mxu0 0
    %1067 = vmatpush.bf16.msra.mxu0 0
    %1068 = vmatpush.bf16.msra.mxu0 %v1056
    %1069 = vmatpush.bf16.msra.mxu0 %v1054
    %1070 = vmatpush.bf16.msra.mxu0 %v1052
    %1071 = vmatpush.bf16.msra.mxu0 %v1050
    %1072 = vmatmul.bf16.gmra.mxu0 %v1062
    %v1073 = vpop.f32.mrf.mxu0
    %v1074 = vadd.f32 0.0, %v1073
    %v1075 = vpop.f32.mrf.mxu0
    %v1076 = vadd.f32 0.0, %v1075
    %1077 = vdwg.mxu0
    %1078 = vmatpush.bf16.msra.mxu0 0
    %1079 = vmatpush.bf16.msra.mxu0 0
    %1080 = vmatpush.bf16.msra.mxu0 0
    %1081 = vmatpush.bf16.msra.mxu0 0
    %1082 = vmatpush.bf16.msra.mxu0 %v51
    %1083 = vmatpush.bf16.msra.mxu0 %v50
    %1084 = vmatpush.bf16.msra.mxu0 %v49
    %1085 = vmatpush.bf16.msra.mxu0 %v48
    %1086 = vmatmul.bf16.gmra.mxu0 %v1062
    %v1087 = vpop.f32.mrf.mxu0
    %v1088 = vadd.f32 1e-30, %v1087
    %v1089 = vpop.f32.mrf.mxu0
    %v1090 = vadd.f32 1e-30, %v1089
    %1091 = vdwg.mxu0
    %v1092 = vrcp.pop %v1088
    %v1093 = vrcp.pop %v1090
    %v1094 = vmul.f32 %v1074, %v1092
    %v1095 = vmul.f32 %v1076, %v1093
    %v1096 = vpack.c.bf16 %v1095, %v1094
    %v1097 = vperm.slane %v916, 0
    %v1102 = vunpack.c.l.b16 %v912
    %v1103 = vunpack.c.l.b16 %v913
    %v1104 = vunpack.c.l.b16 %v914
    %v1105 = vunpack.c.l.b16 %v915
    %v1106 = vpack.c.b16 %v1103, %v1102
    %v1107 = vpack.c.b16 %v1105, %v1104
    %v1111 = vsel %vm197, %v1096, 0
    %1113 = vmatpush.bf16.msra.mxu0 0
    %1114 = vmatpush.bf16.msra.mxu0 0
    %1115 = vmatpush.bf16.msra.mxu0 0
    %1116 = vmatpush.bf16.msra.mxu0 0
    %1117 = vmatpush.bf16.msra.mxu0 0
    %1118 = vmatpush.bf16.msra.mxu0 0
    %1119 = vmatpush.bf16.msra.mxu0 %v1107
    %1120 = vmatpush.bf16.msra.mxu0 %v1106
    %1121 = vmatmul.bf16.gmra.mxu0 %v1111
    %v1122 = vpop.f32.mrf.mxu0
    %v1123 = vadd.f32 %v1097, %v1122
    %v1124 = vpop.f32.mrf.mxu0
    %v1125 = vadd.f32 %v1097, %v1124
    %1126 = vdwg.mxu0
    %v1127 = vadd.f32 %v895, %v1123
    %v1128 = vadd.f32 %v896, %v1125
    %v1129 = vld [vmem:[#allocation2 + $0x130] sm:$0x1]
    %v1130 = vld [vmem:[#allocation2 + $0x138] sm:$0x1]
    %v1131 = vsel %vm197, %v1127, 0.0
    %1132 = vadd.xlane.f32.xlu0 %v1131
    %v1133 = vpop.xlane.xlu0 %1132
    %v1134 = vsel %vm197, %v1128, 0.0
    %1135 = vadd.xlane.f32.xlu0 %v1134
    %v1136 = vpop.xlane.xlu0 %1135
    %v1137 = vmul.f32 %v1133, %v210
    %v1138 = vmul.f32 %v1136, %v210
    %v1139 = vsub.f32 %v1127, %v1137
    %v1140 = vsub.f32 %v1128, %v1138
    %v1141 = vmul.f32 %v1139, %v1139
    %v1142 = vmul.f32 %v1140, %v1140
    %v1143 = vsel %vm197, %v1141, 0.0
    %1144 = vadd.xlane.f32.xlu0 %v1143
    %v1145 = vpop.xlane.xlu0 %1144
    %v1146 = vsel %vm197, %v1142, 0.0
    %1147 = vadd.xlane.f32.xlu0 %v1146
    %v1148 = vpop.xlane.xlu0 %1147
    %v1149 = vmul.f32 %v1145, %v210
    %v1150 = vmul.f32 %v1148, %v210
    %v1151 = vadd.f32 %v1149, 1e-12
    %v1152 = vadd.f32 %v1150, 1e-12
    %v1153 = vrsqrt.pop %v1151
    %v1154 = vmul.f32 %v1153, %v1151
    %v1155 = vmul.f32 %v1154, %v1153
    %v1156 = vmul.f32 0.5, %v1155
    %v1157 = vsub.f32 1.5, %v1156
    %v1158 = vmul.f32 %v1153, %v1157
    %vm1159 = vweird.f32 %v1151
    %vm1160 = vweird.f32 %v1153
    %vm1161 = vmor %vm1159, %vm1160
    %v1162 = vsel %vm1161, %v1153, %v1158
    %v1163 = vrsqrt.pop %v1152
    %v1164 = vmul.f32 %v1163, %v1152
    %v1165 = vmul.f32 %v1164, %v1163
    %v1166 = vmul.f32 0.5, %v1165
    %v1167 = vsub.f32 1.5, %v1166
    %v1168 = vmul.f32 %v1163, %v1167
    %vm1169 = vweird.f32 %v1152
    %vm1170 = vweird.f32 %v1163
    %vm1171 = vmor %vm1169, %vm1170
    %v1172 = vsel %vm1171, %v1163, %v1168
    %v1173 = vmul.f32 %v1139, %v1162
    %v1174 = vmul.f32 %v1140, %v1172
    %v1175 = vperm.slane %v1129, 0
    %v1176 = vmul.f32 %v1173, %v1175
    %v1177 = vmul.f32 %v1174, %v1175
    %v1178 = vperm.slane %v1130, 0
    %v1179 = vadd.f32 %v1176, %v1178
    %v1180 = vadd.f32 %v1177, %v1178
    %v1181 = vpack.c.bf16 %v1180, %v1179
    %v1182 = vld [vmem:[%s3 + $0x150] sm:$0xf]
    %v1183 = vld [vmem:[%s3 + $0x154] sm:$0xf]
    %v1184 = vld [vmem:[%s3 + $0x158] sm:$0xf]
    %v1185 = vld [vmem:[%s3 + $0x15c] sm:$0xf]
    %v1186 = vld [vmem:[#allocation2 + $0x118] sm:$0x1]
    %v1187 = vld [vmem:[%s3 + $0x160] sm:$0xf]
    %v1188 = vld [vmem:[%s3 + $0x164] sm:$0xf]
    %v1189 = vld [vmem:[%s3 + $0x168] sm:$0xf]
    %v1190 = vld [vmem:[%s3 + $0x16c] sm:$0xf]
    %v1191 = vld [vmem:[#allocation2 + $0x120] sm:$0x1]
    %v1192 = vld [vmem:[%s3 + $0x170] sm:$0xf]
    %v1193 = vld [vmem:[%s3 + $0x174] sm:$0xf]
    %v1194 = vld [vmem:[%s3 + $0x178] sm:$0xf]
    %v1195 = vld [vmem:[%s3 + $0x17c] sm:$0xf]
    %v1196 = vld [vmem:[#allocation2 + $0x128] sm:$0x1]
    %v1197 = vperm.slane %v1186, 0
    %v1202 = vunpack.c.l.b16 %v1182
    %v1203 = vunpack.c.l.b16 %v1183
    %v1204 = vunpack.c.l.b16 %v1184
    %v1205 = vunpack.c.l.b16 %v1185
    %v1206 = vpack.c.b16 %v1203, %v1202
    %v1207 = vpack.c.b16 %v1205, %v1204
    %v1211 = vsel %vm197, %v1181, 0
    %1213 = vmatpush.bf16.msra.mxu0 0
    %1214 = vmatpush.bf16.msra.mxu0 0
    %1215 = vmatpush.bf16.msra.mxu0 0
    %1216 = vmatpush.bf16.msra.mxu0 0
    %1217 = vmatpush.bf16.msra.mxu0 0
    %1218 = vmatpush.bf16.msra.mxu0 0
    %1219 = vmatpush.bf16.msra.mxu0 %v1207
    %1220 = vmatpush.bf16.msra.mxu0 %v1206
    %1221 = vmatmul.bf16.gmra.mxu0 %v1211
    %v1222 = vpop.f32.mrf.mxu0
    %v1223 = vadd.f32 %v1197, %v1222
    %v1224 = vpop.f32.mrf.mxu0
    %v1225 = vadd.f32 %v1197, %v1224
    %1226 = vdwg.mxu0
    %v1227 = vperm.slane %v1191, 0
    %v1232 = vunpack.c.l.b16 %v1187
    %v1233 = vunpack.c.l.b16 %v1188
    %v1234 = vunpack.c.l.b16 %v1189
    %v1235 = vunpack.c.l.b16 %v1190
    %v1236 = vpack.c.b16 %v1233, %v1232
    %v1237 = vpack.c.b16 %v1235, %v1234
    %v1241 = vsel %vm197, %v756, 0
    %1243 = vmatpush.bf16.msra.mxu0 0
    %1244 = vmatpush.bf16.msra.mxu0 0
    %1245 = vmatpush.bf16.msra.mxu0 0
    %1246 = vmatpush.bf16.msra.mxu0 0
    %1247 = vmatpush.bf16.msra.mxu0 0
    %1248 = vmatpush.bf16.msra.mxu0 0
    %1249 = vmatpush.bf16.msra.mxu0 %v1237
    %1250 = vmatpush.bf16.msra.mxu0 %v1236
    %1251 = vmatmul.bf16.gmra.mxu0 %v1241
    %v1252 = vpop.f32.mrf.mxu0
    %v1253 = vadd.f32 %v1227, %v1252
    %v1254 = vpop.f32.mrf.mxu0
    %v1255 = vadd.f32 %v1227, %v1254
    %1256 = vdwg.mxu0
    %v1257 = vmul.f32 %v1253, %v40
    %v1258 = vmul.f32 %v1255, %v41
    %v1259 = vmul.f32 %v1253, %v42
    %v1260 = vmul.f32 %v1255, %v43
    %v1261 = vmul.f32 %v1253, %v44
    %v1262 = vmul.f32 %v1255, %v45
    %v1263 = vmul.f32 %v1253, %v46
    %v1264 = vmul.f32 %v1255, %v47
    %v1265 = vpack.c.bf16 %v1258, %v1257
    %v1266 = vpack.c.bf16 %v1260, %v1259
    %v1267 = vpack.c.bf16 %v1262, %v1261
    %v1268 = vpack.c.bf16 %v1264, %v1263
    %v1269 = vmul.f32 %v1253, %v349
    %v1270 = vmul.f32 %v1255, %v351
    %v1271 = vmul.f32 %v1253, %v353
    %v1272 = vmul.f32 %v1255, %v355
    %v1273 = vmul.f32 %v1253, %v357
    %v1274 = vmul.f32 %v1255, %v359
    %v1275 = vmul.f32 %v1253, %v361
    %v1276 = vmul.f32 %v1255, %v363
    %v1277 = vpack.c.bf16 %v1270, %v1269
    %v1278 = vpack.c.bf16 %v1272, %v1271
    %v1279 = vpack.c.bf16 %v1274, %v1273
    %v1280 = vpack.c.bf16 %v1276, %v1275
    %v1281 = vpack.c.bf16 %v1225, %v1223
    %v1283 = vsel %vm197, %v1281, 0
    %v1286 = vsel %vm197, %v1265, 0
    %v1289 = vsel %vm197, %v1266, 0
    %v1292 = vsel %vm197, %v1267, 0
    %v1295 = vsel %vm197, %v1268, 0
    %1297 = vmatpush.bf16.xpose.msra.mxu0 0
    %1298 = vmatpush.bf16.xpose.msra.mxu0 0
    %1299 = vmatpush.bf16.xpose.msra.mxu0 0
    %1300 = vmatpush.bf16.xpose.msra.mxu0 0
    %1301 = vmatpush.bf16.xpose.msra.mxu0 %v1295
    %1302 = vmatpush.bf16.xpose.msra.mxu0 %v1292
    %1303 = vmatpush.bf16.xpose.msra.mxu0 %v1289
    %1304 = vmatpush.bf16.xpose.msra.mxu0 %v1286
    %1305 = vmatmul.bf16.gmra.mxu0 %v1283
    %v1306 = vpop.f32.mrf.mxu0
    %v1307 = vadd.f32 0.0, %v1306
    %v1308 = vpop.f32.mrf.mxu0
    %v1309 = vadd.f32 0.0, %v1308
    %1310 = vdwg.mxu0
    %v1311 = vmul.f32 %v1307, 0.35355338
    %v1312 = vmul.f32 %v1309, 0.35355338
    %v1313 = vadd.f32 %v1311, %v899
    %v1314 = vadd.f32 %v1312, %v900
    %v1315 = vsel %vm161, %v1313, -inf
    %1316 = vmax.xlane.f32.xlu0 %v1315
    %v1317 = vpop.xlane.xlu0 %1316
    %v1318 = vsel %vm161, %v1314, -inf
    %1319 = vmax.xlane.f32.xlu0 %v1318
    %v1320 = vpop.xlane.xlu0 %1319
    %v1321 = vsub.f32 %v1313, %v1317
    %v1322 = vsub.f32 %v1314, %v1320
    %v1323 = vmul.f32 %v1321, 1.442695
    %v1324 = vpow.pop %v1323
    %v1325 = vmul.f32 %v1322, 1.442695
    %v1326 = vpow.pop %v1325
    %v1327 = vpack.c.bf16 %v1326, %v1324
    %1332 = vrot.lane.b32.xlu0 %v1277, 96
    %v1333 = vpop.permute.xlu0 %1332
    %1334 = vrot.lane.b32.xlu0 %v1278, 96
    %v1335 = vpop.permute.xlu0 %1334
    %1336 = vrot.lane.b32.xlu0 %v1279, 96
    %v1337 = vpop.permute.xlu0 %1336
    %1338 = vrot.lane.b32.xlu0 %v1280, 96
    %v1339 = vpop.permute.xlu0 %1338
    %v1345 = vsel %vm161, %v1327, 0
    %1347 = vmatpush.bf16.msra.mxu0 0
    %1348 = vmatpush.bf16.msra.mxu0 0
    %1349 = vmatpush.bf16.msra.mxu0 0
    %1350 = vmatpush.bf16.msra.mxu0 0
    %1351 = vmatpush.bf16.msra.mxu0 %v1339
    %1352 = vmatpush.bf16.msra.mxu0 %v1337
    %1353 = vmatpush.bf16.msra.mxu0 %v1335
    %1354 = vmatpush.bf16.msra.mxu0 %v1333
    %1355 = vmatmul.bf16.gmra.mxu0 %v1345
    %v1356 = vpop.f32.mrf.mxu0
    %v1357 = vadd.f32 0.0, %v1356
    %v1358 = vpop.f32.mrf.mxu0
    %v1359 = vadd.f32 0.0, %v1358
    %1360 = vdwg.mxu0
    %1361 = vmatpush.bf16.msra.mxu0 0
    %1362 = vmatpush.bf16.msra.mxu0 0
    %1363 = vmatpush.bf16.msra.mxu0 0
    %1364 = vmatpush.bf16.msra.mxu0 0
    %1365 = vmatpush.bf16.msra.mxu0 %v51
    %1366 = vmatpush.bf16.msra.mxu0 %v50
    %1367 = vmatpush.bf16.msra.mxu0 %v49
    %1368 = vmatpush.bf16.msra.mxu0 %v48
    %1369 = vmatmul.bf16.gmra.mxu0 %v1345
    %v1370 = vpop.f32.mrf.mxu0
    %v1371 = vadd.f32 1e-30, %v1370
    %v1372 = vpop.f32.mrf.mxu0
    %v1373 = vadd.f32 1e-30, %v1372
    %1374 = vdwg.mxu0
    %v1375 = vrcp.pop %v1371
    %v1376 = vrcp.pop %v1373
    %v1377 = vmul.f32 %v1357, %v1375
    %v1378 = vmul.f32 %v1359, %v1376
    %v1379 = vpack.c.bf16 %v1378, %v1377
    %v1380 = vperm.slane %v1196, 0
    %v1385 = vunpack.c.l.b16 %v1192
    %v1386 = vunpack.c.l.b16 %v1193
    %v1387 = vunpack.c.l.b16 %v1194
    %v1388 = vunpack.c.l.b16 %v1195
    %v1389 = vpack.c.b16 %v1386, %v1385
    %v1390 = vpack.c.b16 %v1388, %v1387
    %v1394 = vsel %vm197, %v1379, 0
    %1396 = vmatpush.bf16.msra.mxu0 0
    %1397 = vmatpush.bf16.msra.mxu0 0
    %1398 = vmatpush.bf16.msra.mxu0 0
    %1399 = vmatpush.bf16.msra.mxu0 0
    %1400 = vmatpush.bf16.msra.mxu0 0
    %1401 = vmatpush.bf16.msra.mxu0 0
    %1402 = vmatpush.bf16.msra.mxu0 %v1390
    %1403 = vmatpush.bf16.msra.mxu0 %v1389
    %1404 = vmatmul.bf16.gmra.mxu0 %v1394
    %v1405 = vpop.f32.mrf.mxu0
    %v1406 = vadd.f32 %v1380, %v1405
    %v1407 = vpop.f32.mrf.mxu0
    %v1408 = vadd.f32 %v1380, %v1407
    %1409 = vdwg.mxu0
    %v1410 = vadd.f32 %v1179, %v1406
    %v1411 = vadd.f32 %v1180, %v1408
    %v1412 = vld [vmem:[#allocation2 + $0x140] sm:$0x1]
    %v1413 = vld [vmem:[#allocation2 + $0x148] sm:$0x1]
    %v1414 = vsel %vm197, %v1410, 0.0
    %1415 = vadd.xlane.f32.xlu0 %v1414
    %v1416 = vpop.xlane.xlu0 %1415
    %v1417 = vsel %vm197, %v1411, 0.0
    %1418 = vadd.xlane.f32.xlu0 %v1417
    %v1419 = vpop.xlane.xlu0 %1418
    %v1420 = vmul.f32 %v1416, %v210
    %v1421 = vmul.f32 %v1419, %v210
    %v1422 = vsub.f32 %v1410, %v1420
    %v1423 = vsub.f32 %v1411, %v1421
    %v1424 = vmul.f32 %v1422, %v1422
    %v1425 = vmul.f32 %v1423, %v1423
    %v1426 = vsel %vm197, %v1424, 0.0
    %1427 = vadd.xlane.f32.xlu0 %v1426
    %v1428 = vpop.xlane.xlu0 %1427
    %v1429 = vsel %vm197, %v1425, 0.0
    %1430 = vadd.xlane.f32.xlu0 %v1429
    %v1431 = vpop.xlane.xlu0 %1430
    %v1432 = vmul.f32 %v1428, %v210
    %v1433 = vmul.f32 %v1431, %v210
    %v1434 = vadd.f32 %v1432, 1e-12
    %v1435 = vadd.f32 %v1433, 1e-12
    %v1436 = vrsqrt.pop %v1434
    %v1437 = vmul.f32 %v1436, %v1434
    %v1438 = vmul.f32 %v1437, %v1436
    %v1439 = vmul.f32 0.5, %v1438
    %v1440 = vsub.f32 1.5, %v1439
    %v1441 = vmul.f32 %v1436, %v1440
    %vm1442 = vweird.f32 %v1434
    %vm1443 = vweird.f32 %v1436
    %vm1444 = vmor %vm1442, %vm1443
    %v1445 = vsel %vm1444, %v1436, %v1441
    %v1446 = vrsqrt.pop %v1435
    %v1447 = vmul.f32 %v1446, %v1435
    %v1448 = vmul.f32 %v1447, %v1446
    %v1449 = vmul.f32 0.5, %v1448
    %v1450 = vsub.f32 1.5, %v1449
    %v1451 = vmul.f32 %v1446, %v1450
    %vm1452 = vweird.f32 %v1435
    %vm1453 = vweird.f32 %v1446
    %vm1454 = vmor %vm1452, %vm1453
    %v1455 = vsel %vm1454, %v1446, %v1451
    %v1456 = vmul.f32 %v1422, %v1445
    %v1457 = vmul.f32 %v1423, %v1455
    %v1458 = vperm.slane %v1412, 0
    %v1459 = vmul.f32 %v1456, %v1458
    %v1460 = vmul.f32 %v1457, %v1458
    %v1461 = vperm.slane %v1413, 0
    %v1462 = vadd.f32 %v1459, %v1461
    %v1463 = vadd.f32 %v1460, %v1461
    %v1464 = vpack.c.bf16 %v1463, %v1462
    %v1465 = vld [vmem:[%s3 + $0x180] sm:$0xf]
    %v1466 = vld [vmem:[%s3 + $0x184] sm:$0xf]
    %v1467 = vld [vmem:[%s3 + $0x188] sm:$0xf]
    %v1468 = vld [vmem:[%s3 + $0x18c] sm:$0xf]
    %v1469 = vld [vmem:[#allocation2 + $0x160] sm:$0x1]
    %v1470 = vld [vmem:[%s3 + $0x190] sm:$0xf]
    %v1471 = vld [vmem:[%s3 + $0x194] sm:$0xf]
    %v1472 = vld [vmem:[%s3 + $0x198] sm:$0xf]
    %v1473 = vld [vmem:[%s3 + $0x19c] sm:$0xf]
    %v1474 = vld [vmem:[%s3 + $0x1a0] sm:$0xf]
    %v1475 = vld [vmem:[%s3 + $0x1a4] sm:$0xf]
    %v1476 = vld [vmem:[%s3 + $0x1a8] sm:$0xf]
    %v1477 = vld [vmem:[%s3 + $0x1ac] sm:$0xf]
    %v1478 = vld [vmem:[%s3 + $0x1b0] sm:$0xf]
    %v1479 = vld [vmem:[%s3 + $0x1b4] sm:$0xf]
    %v1480 = vld [vmem:[%s3 + $0x1b8] sm:$0xf]
    %v1481 = vld [vmem:[%s3 + $0x1bc] sm:$0xf]
    %v1482 = vld [vmem:[%s3 + $0x1c0] sm:$0xf]
    %v1483 = vld [vmem:[%s3 + $0x1c4] sm:$0xf]
    %v1484 = vld [vmem:[%s3 + $0x1c8] sm:$0xf]
    %v1485 = vld [vmem:[%s3 + $0x1cc] sm:$0xf]
    %v1486 = vld [vmem:[#allocation2 + $0x168] sm:$0x1]
    %v1487 = vperm.slane %v1469, 0
    %v1492 = vunpack.c.l.b16 %v1465
    %v1493 = vunpack.c.l.b16 %v1466
    %v1494 = vunpack.c.l.b16 %v1467
    %v1495 = vunpack.c.l.b16 %v1468
    %v1496 = vpack.c.b16 %v1493, %v1492
    %v1497 = vpack.c.b16 %v1495, %v1494
    %v1501 = vsel %vm197, %v1464, 0
    %1503 = vmatpush.bf16.msra.mxu0 0
    %1504 = vmatpush.bf16.msra.mxu0 0
    %1505 = vmatpush.bf16.msra.mxu0 0
    %1506 = vmatpush.bf16.msra.mxu0 0
    %1507 = vmatpush.bf16.msra.mxu0 0
    %1508 = vmatpush.bf16.msra.mxu0 0
    %1509 = vmatpush.bf16.msra.mxu0 %v1497
    %1510 = vmatpush.bf16.msra.mxu0 %v1496
    %1511 = vmatmul.bf16.gmra.mxu0 %v1501
    %v1512 = vpop.f32.mrf.mxu0
    %v1513 = vadd.f32 %v1487, %v1512
    %v1514 = vpop.f32.mrf.mxu0
    %v1515 = vadd.f32 %v1487, %v1514
    %1516 = vdwg.mxu0
    %v1517 = vmul.f32 %v1513, %v1513
    %v1518 = vmul.f32 %v1515, %v1515
    %v1519 = vmul.f32 %v1513, %v1517
    %v1520 = vmul.f32 %v1515, %v1518
    %v1521 = vmul.f32 %v1519, 0.044715
    %v1522 = vmul.f32 %v1520, 0.044715
    %v1523 = vadd.f32 %v1513, %v1521
    %v1524 = vadd.f32 %v1515, %v1522
    %v1525 = vmul.f32 %v1523, 0.7978846
    %v1526 = vmul.f32 %v1524, 0.7978846
    %v1527 = vtanh.pop %v1525
    %v1528 = vtanh.pop %v1526
    %v1529 = vadd.f32 %v1527, 1.0
    %v1530 = vadd.f32 %v1528, 1.0
    %v1531 = vmul.f32 %v1529, 0.5
    %v1532 = vmul.f32 %v1530, 0.5
    %v1533 = vmul.f32 %v1513, %v1531
    %v1534 = vmul.f32 %v1515, %v1532
    %v1535 = vpack.c.bf16 %v1534, %v1533
    %v1536 = vperm.slane %v1486, 0
    %v1553 = vunpack.c.l.b16 %v1470
    %v1554 = vunpack.c.l.b16 %v1471
    %v1555 = vunpack.c.l.b16 %v1472
    %v1556 = vunpack.c.l.b16 %v1473
    %v1557 = vunpack.c.l.b16 %v1474
    %v1558 = vunpack.c.l.b16 %v1475
    %v1559 = vunpack.c.l.b16 %v1476
    %v1560 = vunpack.c.l.b16 %v1477
    %v1561 = vunpack.c.l.b16 %v1478
    %v1562 = vunpack.c.l.b16 %v1479
    %v1563 = vunpack.c.l.b16 %v1480
    %v1564 = vunpack.c.l.b16 %v1481
    %v1565 = vunpack.c.l.b16 %v1482
    %v1566 = vunpack.c.l.b16 %v1483
    %v1567 = vunpack.c.l.b16 %v1484
    %v1568 = vunpack.c.l.b16 %v1485
    %v1569 = vpack.c.b16 %v1554, %v1553
    %v1570 = vpack.c.b16 %v1556, %v1555
    %v1571 = vpack.c.b16 %v1558, %v1557
    %v1572 = vpack.c.b16 %v1560, %v1559
    %v1573 = vpack.c.b16 %v1562, %v1561
    %v1574 = vpack.c.b16 %v1564, %v1563
    %v1575 = vpack.c.b16 %v1566, %v1565
    %v1576 = vpack.c.b16 %v1568, %v1567
    %1585 = vmatpush.bf16.msra.mxu0 %v1576
    %1586 = vmatpush.bf16.msra.mxu0 %v1575
    %1587 = vmatpush.bf16.msra.mxu0 %v1574
    %1588 = vmatpush.bf16.msra.mxu0 %v1573
    %1589 = vmatpush.bf16.msra.mxu0 %v1572
    %1590 = vmatpush.bf16.msra.mxu0 %v1571
    %1591 = vmatpush.bf16.msra.mxu0 %v1570
    %1592 = vmatpush.bf16.msra.mxu0 %v1569
    %1593 = vmatmul.bf16.gmra.mxu0 %v1535
    %v1594 = vpop.f32.mrf.mxu0
    %v1595 = vadd.f32 %v1536, %v1594
    %v1596 = vpop.f32.mrf.mxu0
    %v1597 = vadd.f32 %v1536, %v1596
    %1598 = vdwg.mxu0
    %v1599 = vadd.f32 %v1462, %v1595
    %v1600 = vadd.f32 %v1463, %v1597
    %v1601 = vld [vmem:[#allocation2 + $0x150] sm:$0x1]
    %v1602 = vld [vmem:[#allocation2 + $0x158] sm:$0x1]
    %v1603 = vsel %vm197, %v1599, 0.0
    %1604 = vadd.xlane.f32.xlu0 %v1603
    %v1605 = vpop.xlane.xlu0 %1604
    %v1606 = vsel %vm197, %v1600, 0.0
    %1607 = vadd.xlane.f32.xlu0 %v1606
    %v1608 = vpop.xlane.xlu0 %1607
    %v1609 = vmul.f32 %v1605, %v210
    %v1610 = vmul.f32 %v1608, %v210
    %v1611 = vsub.f32 %v1599, %v1609
    %v1612 = vsub.f32 %v1600, %v1610
    %v1613 = vmul.f32 %v1611, %v1611
    %v1614 = vmul.f32 %v1612, %v1612
    %v1615 = vsel %vm197, %v1613, 0.0
    %1616 = vadd.xlane.f32.xlu0 %v1615
    %v1617 = vpop.xlane.xlu0 %1616
    %v1618 = vsel %vm197, %v1614, 0.0
    %1619 = vadd.xlane.f32.xlu0 %v1618
    %v1620 = vpop.xlane.xlu0 %1619
    %v1621 = vmul.f32 %v1617, %v210
    %v1622 = vmul.f32 %v1620, %v210
    %v1623 = vadd.f32 %v1621, 1e-12
    %v1624 = vadd.f32 %v1622, 1e-12
    %v1625 = vrsqrt.pop %v1623
    %v1626 = vmul.f32 %v1625, %v1623
    %v1627 = vmul.f32 %v1626, %v1625
    %v1628 = vmul.f32 0.5, %v1627
    %v1629 = vsub.f32 1.5, %v1628
    %v1630 = vmul.f32 %v1625, %v1629
    %vm1631 = vweird.f32 %v1623
    %vm1632 = vweird.f32 %v1625
    %vm1633 = vmor %vm1631, %vm1632
    %v1634 = vsel %vm1633, %v1625, %v1630
    %v1635 = vrsqrt.pop %v1624
    %v1636 = vmul.f32 %v1635, %v1624
    %v1637 = vmul.f32 %v1636, %v1635
    %v1638 = vmul.f32 0.5, %v1637
    %v1639 = vsub.f32 1.5, %v1638
    %v1640 = vmul.f32 %v1635, %v1639
    %vm1641 = vweird.f32 %v1624
    %vm1642 = vweird.f32 %v1635
    %vm1643 = vmor %vm1641, %vm1642
    %v1644 = vsel %vm1643, %v1635, %v1640
    %v1645 = vmul.f32 %v1611, %v1634
    %v1646 = vmul.f32 %v1612, %v1644
    %v1647 = vperm.slane %v1601, 0
    %v1648 = vmul.f32 %v1645, %v1647
    %v1649 = vmul.f32 %v1646, %v1647
    %v1650 = vperm.slane %v1602, 0
    %v1651 = vadd.f32 %v1648, %v1650
    %v1652 = vadd.f32 %v1649, %v1650
    %v1653 = vpack.c.bf16 %v1652, %v1651
    %v1654 = vld [vmem:[#allocation2 + $0xb0] sm:$0x1]
    %v1655 = vperm.slane %v1654, 0
    %v1657 = vsel %vm197, %v1653, 0
    %v1660 = vsel %vm197, %v815, 0
    %v1663 = vsel %vm197, %v816, 0
    %v1666 = vsel %vm197, %v817, 0
    %v1669 = vsel %vm197, %v818, 0
    %v1672 = vsel %vm197, %v819, 0
    %v1675 = vsel %vm197, %v820, 0
    %v1678 = vsel %vm197, %v821, 0
    %v1681 = vsel %vm197, %v822, 0
    %1683 = vmatpush.bf16.xpose.msra.mxu0 %v1681
    %1684 = vmatpush.bf16.xpose.msra.mxu0 %v1678
    %1685 = vmatpush.bf16.xpose.msra.mxu0 %v1675
    %1686 = vmatpush.bf16.xpose.msra.mxu0 %v1672
    %1687 = vmatpush.bf16.xpose.msra.mxu0 %v1669
    %1688 = vmatpush.bf16.xpose.msra.mxu0 %v1666
    %1689 = vmatpush.bf16.xpose.msra.mxu0 %v1663
    %1690 = vmatpush.bf16.xpose.msra.mxu0 %v1660
    %1691 = vmatmul.bf16.gmra.mxu0 %v1657
    %v1692 = vpop.f32.mrf.mxu0
    %v1693 = vadd.f32 %v1655, %v1692
    %v1694 = vpop.f32.mrf.mxu0
    %v1695 = vadd.f32 %v1655, %v1694
    %1696 = vdwg.mxu0
    %1697 = vst [vmem:[%s5] sm:$0xff] %v1693
    %1698 = vst [vmem:[%s5 + $0x8] sm:$0xff] %v1695
    %1699 = vmax.xlane.f32.xlu0 %v1693
    %v1700 = vpop.xlane.xlu0 %1699
    %1701 = vmax.xlane.f32.xlu0 %v1695
    %v1702 = vpop.xlane.xlu0 %1701
    %v1703 = vsub.f32 %v1693, %v1700
    %v1704 = vsub.f32 %v1695, %v1702
    %v1705 = vmul.f32 %v1703, 1.442695
    %v1706 = vpow.pop %v1705
    %v1707 = vmul.f32 %v1704, 1.442695
    %v1708 = vpow.pop %v1707
    %1709 = vadd.xlane.f32.xlu0 %v1706
    %v1710 = vpop.xlane.xlu0 %1709
    %1711 = vadd.xlane.f32.xlu0 %v1708
    %v1712 = vpop.xlane.xlu0 %1711
    %v1713 = vlog2.pop %v1710
    %v1714 = vmul.f32 %v1713, 0.6931472
    %v1715 = vlog2.pop %v1712
    %v1716 = vmul.f32 %v1715, 0.6931472
    %v1717 = vadd.f32 %v1714, %v1700
    %v1718 = vadd.f32 %v1716, %v1702
    %v1719 = vld [vmem:[%s2] sm:$0xff]
    %v1720 = vld [vmem:[%s2 + $0x8] sm:$0xff]
    %1721 = vadd.xlane.f32.xlu0 %v1719
    %v1722 = vpop.xlane.xlu0 %1721
    %1723 = vadd.xlane.f32.xlu0 %v1720
    %v1724 = vpop.xlane.xlu0 %1723
    %v1725 = vmul.f32 %v1717, %v1722
    %v1726 = vmul.f32 %v1718, %v1724
    %vm1727 = vcmask 7168
    %v1728 = vsel %vm1727, %v1725, 0.0
    %v1729 = vsel %vm1727, %v1726, 0.0
    %v1730 = vadd.f32 %v1728, %v1729
    %1731 = vadd.xlane.f32.xlu0 %v1730
    %v1732 = vpop.xlane.xlu0 %1731
    %v1733 = vrot.slane %v1732, 4
    %v1734 = vadd.f32 %v1732, %v1733
    %v1735 = vrot.slane %v1734, 2
    %v1736 = vadd.f32 %v1734, %v1735
    %v1737 = vrot.slane %v1736, 1
    %v1738 = vadd.f32 %v1736, %v1737
    %s1739 = vtos %v1738
    %v1740 = vmul.f32 %v1693, %v1719
    %v1741 = vmul.f32 %v1695, %v1720
    %v1742 = vadd.f32 %v1740, %v1741
    %1743 = vadd.xlane.f32.xlu0 %v1742
    %v1744 = vpop.xlane.xlu0 %1743
    %v1745 = vrot.slane %v1744, 4
    %v1746 = vadd.f32 %v1744, %v1745
    %v1747 = vrot.slane %v1746, 2
    %v1748 = vadd.f32 %v1746, %v1747
    %v1749 = vrot.slane %v1748, 1
    %v1750 = vadd.f32 %v1748, %v1749
    %s1751 = vtos %v1750
    %s1752 = ssub.f32 %s1739, %s1751
    %s1753 = smul.f32 %s1752, 0.071428575
    %s1754 = scalar_lea.smem [#allocation5], 0
    %1755 = sst [smem:[%s1754]] %s1753
    // Predicated region
    $region26: #{blip_loss.1} parent=1 // pred_check
      _
    $region27: #{blip_loss.1} parent=1 // pred_check_branch
      %1757 = sbr.rel (0) target = $region29
    $region28: #{blip_loss.1} parent=1 // pred_region
      _
    $region29: #{blip_loss.1} parent=1 // pred_fallthru
      _
    // Predicated region
    $region30: #{blip_loss.1} parent=1 // pred_check
      _
    $region31: #{blip_loss.1} parent=1 // pred_check_branch
      %1759 = sbr.rel (0) target = $region33
    $region32: #{blip_loss.1} parent=1 // pred_region
      %1761 = vsyncadd [#allocation4], 0
      %s1763 = sshll.u32 %s6, 4
      %s1764 = int_to_ptr.hbm [resolvable:$true] %s1763
      %1766 = dma.smem_to_hbm [#allocation5], 16, %s1764, [#allocation4]
    $region33: #{blip_loss.1} parent=1 // pred_fallthru
      _
    // Predicated region
    $region34: #{blip_loss.1} parent=1 // pred_check
      _
    $region35: #{blip_loss.1} parent=1 // pred_check_branch
      %1768 = sbr.rel (0) target = $region37
    $region36: #{blip_loss.1} parent=1 // pred_region
      _
    $region37: #{blip_loss.1} parent=1 // pred_fallthru
      _
    // Predicated region
    $region38: #{blip_loss.1} parent=1 // pred_check
      _
    $region39: #{blip_loss.1} parent=1 // pred_check_branch
      %1770 = sbr.rel (0) target = $region41
    $region40: #{blip_loss.1} parent=1 // pred_region
      %1772 = dma.done [#allocation4], 16
    $region41: #{blip_loss.1} parent=1 // pred_fallthru
      _
    %1773 = sfence
    %1774 = vsyncpa [#allocation3], 1
    %1775 = vsyncpa [#allocation4], 1

</llo_original>
